<compile_context>
chip_gen: v7x
topology: tpu7x:2x2x1
jax: 0.10.0
libtpu: 0.0.40
codegen_flags: <defaults>
</compile_context>

<pallas_src>
import jax
import jax.numpy as jnp
from jax.experimental import pallas as pl
from jax.experimental.pallas import tpu as pltpu


# ----------------------------------------------------------------------------
# Pallas kernel: the whole GDPModel2 forward (all GATConv layers fused)
# ----------------------------------------------------------------------------
def make_fused_gdp_kernel(layer_cfg):
    """layer_cfg: list of (in_ch, out_ch, heads) per layer (static, last layer padded)."""
    n_layers = len(layer_cfg)

    def kernel(*refs):
        # refs = x, adj_bias, eattr, (W, asrc, adst, we_att, bias) * n_layers, o_ref
        x_ref, adjb_ref, ea_ref = refs[0], refs[1], refs[2]
        p_refs = refs[3:3 + 5 * n_layers]
        o_ref = refs[3 + 5 * n_layers]

        adjb = adjb_ref[...]          # [N, N] additive softmax mask (0 edge / -1e30 non-edge)
        ea = ea_ref[...]              # [N, N] dense edge attr (edge_dim=1), 0 at non-edges

        # Activations are carried as a list of per-head column blocks (values in vregs);
        # nothing is written back to VMEM until the final output store.
        blocks = [x_ref[...]]
        widths = [x_ref.shape[-1]]

        for li, (_, out_ch, heads) in enumerate(layer_cfg):
            w_ref, asrc_ref, adst_ref, we_ref, bias_ref = p_refs[5 * li:5 * li + 5]
            last = li == n_layers - 1

            # xp = concat(blocks) @ W, computed as a sum over row blocks of W -> no
            # concatenate, no scratch, no partial stores; each term is a tiny MXU push.
            xp = None
            off = 0
            for blk, w in zip(blocks, widths):
                part = jnp.dot(blk, w_ref[off:off + w, :],
                               preferred_element_type=jnp.float32)
                xp = part if xp is None else xp + part
                off += w                                     # static sublane-aligned offsets

            # per-node attention terms (block-diagonal att matrices, see init):
            #   a_dst[n, h] (column form)   a_srcT[h, n] (row form, MXU-native)
            a_dst = jnp.dot(xp, adst_ref[...], preferred_element_type=jnp.float32)   # [N, H]
            a_srcT = jax.lax.dot_general(                                            # [H, N]
                asrc_ref[...], xp, dimension_numbers=(((0,), (1,)), ((), ())),
                preferred_element_type=jnp.float32)

            we = we_ref[...]          # [1, H]   edge-attention scalar per head
            bias = bias_ref[...]      # [1, H*C]

            new_blocks = []
            for hh in range(heads):   # static, small head count
                lo, hi = hh * out_ch, (hh + 1) * out_ch
                # logits for edge j -> i : alpha_dst[i] + alpha_src[j] + edge term
                z = a_dst[:, hh:hh + 1] + a_srcT[hh:hh + 1, :] + ea * we[0:1, hh:hh + 1]
                z = jnp.maximum(z, 0.2 * z) + adjb          # fused leaky_relu(0.2) + mask add
                z = z - jnp.max(z, axis=1, keepdims=True)   # stable softmax over src j
                p = jnp.exp(z)                              # masked entries underflow to 0
                denom = jnp.sum(p, axis=1, keepdims=True)   # >= 1 (self-loop contributes 1)

                # aggregate first, normalize after (per-row factor comes out of the dot)
                agg = jnp.dot(p, xp[:, lo:hi], preferred_element_type=jnp.float32)   # [N, C]
                agg = agg * pl.reciprocal(denom, approx=False)   # exact (correctness note)

                y = jnp.tanh(agg + bias[0:1, lo:hi])
                if last:
                    y = jax.nn.sigmoid(y)
                new_blocks.append(y)

            blocks, widths = new_blocks, [out_ch] * heads

        # Last layer has heads == 1 and out_ch padded to the lane-dense output width, so
        # this is a single full-width, unmasked store.
        o_ref[...] = blocks[0]

    return kernel


def gdp_model2_forward(x, adj_bias, eattr, layer_cfg, params):
    """x: [B, N, F0]; adj_bias/eattr: [B, N, N]. Returns [B, N, num_class]."""
    B, N, F0 = x.shape
    last_in, last_out, last_heads = layer_cfg[-1]
    assert last_heads == 1
    out_w = last_out
    out_pad = ((out_w + 127) // 128) * 128       # lane-dense final store

    # Zero-pad the last layer's (tiny) params to out_pad output columns: the MXU is >=128
    # lanes wide anyway, extra columns give tanh(0)=0 -> sigmoid 0.5 and are sliced off.
    W, asrc, adst, we, bias = params[-1]
    pc = out_pad - out_w
    kparams = list(params[:-1]) + [(
        jnp.pad(W, ((0, 0), (0, pc))),
        jnp.pad(asrc, ((0, pc), (0, 0))),
        jnp.pad(adst, ((0, pc), (0, 0))),
        we,
        jnp.pad(bias, ((0, 0), (0, pc))),
    )]
    kcfg = list(layer_cfg[:-1]) + [(last_in, out_pad, 1)]

    flat_params = [a for p in kparams for a in p]
    flat_args = [x, adj_bias, eattr] + flat_params

    # Per-graph tensors: one (squeezed) batch block per grid step.
    graph_spec = lambda w: pl.BlockSpec((None, N, w), lambda b: (b, 0, 0))
    # Weights: constant block index across the grid -> DMA'd once, stays VMEM-resident.
    shared = lambda a: pl.BlockSpec(a.shape, lambda b: (0,) * a.ndim)

    out = pl.pallas_call(
        make_fused_gdp_kernel(kcfg),
        out_shape=jax.ShapeDtypeStruct((B, N, out_pad), jnp.float32),
        grid=(B,),
        in_specs=[graph_spec(F0), graph_spec(N), graph_spec(N)]
                 + [shared(a) for a in flat_params],
        out_specs=pl.BlockSpec((None, N, out_pad), lambda b: (b, 0, 0)),
        compiler_params=pltpu.CompilerParams(
            dimension_semantics=("parallel",)),      # graphs are independent -> v7x 2nd TC
    )(*flat_args)
    return out[:, :, :out_w]


# ----------------------------------------------------------------------------
# Plain-JAX glue: parameters, dense graph construction, pure-JAX reference
# ----------------------------------------------------------------------------
def init_gat_params(key, in_ch, out_ch, heads):
    k = jax.random.split(key, 5)
    W = jax.random.normal(k[0], (in_ch, heads * out_ch), jnp.float32) / jnp.sqrt(
        jnp.float32(in_ch))
    att_src = jax.random.normal(k[1], (heads, out_ch), jnp.float32) * 0.1
    att_dst = jax.random.normal(k[2], (heads, out_ch), jnp.float32) * 0.1
    att_edge = jax.random.normal(k[3], (heads, out_ch), jnp.float32) * 0.1
    W_edge = jax.random.normal(k[4], (heads * out_ch,), jnp.float32) * 0.1
    bias = jnp.zeros((1, heads * out_ch), jnp.float32)      # GATConv bias init = zeros

    # block-diagonal matrices so alpha = xp @ att_mat gives per-head dot products
    asrc_mat = jnp.zeros((heads * out_ch, heads), jnp.float32)
    adst_mat = jnp.zeros((heads * out_ch, heads), jnp.float32)
    for h in range(heads):
        asrc_mat = asrc_mat.at[h * out_ch:(h + 1) * out_ch, h].set(att_src[h])
        adst_mat = adst_mat.at[h * out_ch:(h + 1) * out_ch, h].set(att_dst[h])

    # edge path collapses (edge_dim = 1): alpha_edge[e, h] = edge_attr[e] * we_att[h]
    we_att = jnp.sum(W_edge.reshape(heads, out_ch) * att_edge, axis=1).reshape(1, heads)
    return (W, asrc_mat, adst_mat, we_att, bias)


def build_dense_graph(edge_index, edge_attr, num_nodes):
    src, dst = edge_index[0], edge_index[1]
    non_self = (src != dst).astype(jnp.float32)
    ea = edge_attr[:, 0]

    # self-loop attr = mean of incoming non-self edge attrs (add_self_loops fill='mean')
    sums = jnp.zeros((num_nodes,), jnp.float32).at[dst].add(ea * non_self)
    cnts = jnp.zeros((num_nodes,), jnp.float32).at[dst].add(non_self)
    loop_attr = jnp.where(cnts > 0, sums / jnp.maximum(cnts, 1.0), 0.0)

    adj = jnp.zeros((num_nodes, num_nodes), jnp.float32).at[dst, src].add(non_self)
    adj = jnp.minimum(adj, 1.0)
    eattr = jnp.zeros((num_nodes, num_nodes), jnp.float32).at[dst, src].set(
        jnp.where(non_self > 0, ea, 0.0))

    diag = jnp.arange(num_nodes)
    adj = adj.at[diag, diag].set(1.0)
    eattr = eattr.at[diag, diag].set(loop_attr)
    adj_bias = jnp.where(adj > 0, 0.0, -1e30).astype(jnp.float32)   # additive softmax mask
    return adj_bias, eattr


def reference_forward(x, adj_bias, eattr, layer_cfg, params):
    """Plain-JAX reference for one graph (same dense-graph semantics as the kernel)."""
    h = x
    is_edge = adj_bias > -1.0
    n_layers = len(layer_cfg)
    for li, ((_, out_ch, heads), (W, asrc, adst, we, bias)) in enumerate(
            zip(layer_cfg, params)):
        xp = h @ W
        a_dst = xp @ adst
        a_src = xp @ asrc
        outs = []
        for hh in range(heads):
            lo, hi = hh * out_ch, (hh + 1) * out_ch
            z = a_dst[:, hh:hh + 1] + a_src[:, hh][None, :] + eattr * we[0, hh]
            z = jnp.where(z > 0, z, 0.2 * z)
            z = jnp.where(is_edge, z, -jnp.inf)
            p = jax.nn.softmax(z, axis=1)
            outs.append(jnp.tanh(p @ xp[:, lo:hi] + bias[0:1, lo:hi]))
        h = jnp.concatenate(outs, axis=-1) if heads > 1 else outs[0]
        if li == n_layers - 1:
            h = jax.nn.sigmoid(h)
    return h


# ----------------------------------------------------------------------------
if __name__ == "__main__":
    key = jax.random.PRNGKey(0)
    B = 2               # graphs per batch (grid axis, marked "parallel")
    N = 16              # nodes per graph
    num_features = 8
    hidden_size = 8
    num_class = 4
    heads = 2
    num_ly_val = 3

    kx, ke, kp = jax.random.split(key, 3)
    x = jax.random.normal(kx, (B, N, num_features), jnp.float32)

    # deterministic simple graph: edges i -> i+1, i -> i+3, i -> i+7 (mod N)
    i = jnp.arange(N)
    src = jnp.concatenate([i, i, i])
    dst = jnp.concatenate([(i + 1) % N, (i + 3) % N, (i + 7) % N])
    edge_index = jnp.stack([src, dst]).astype(jnp.int32)              # [2, E]
    edge_attr = jax.random.normal(ke, (B, edge_index.shape[1], 1), jnp.float32)

    adj_bias, eattr = jax.vmap(lambda ea_: build_dense_graph(edge_index, ea_, N))(edge_attr)

    # layer configuration mirrors GDPModel2.__init__
    layer_cfg = [(num_features, hidden_size, heads)]
    for _ in range(num_ly_val - 2):
        layer_cfg.append((hidden_size * heads, hidden_size, heads))
    layer_cfg.append((hidden_size * heads, num_class, 1))

    keys = jax.random.split(kp, len(layer_cfg))
    params = [init_gat_params(k, ic, oc, h) for k, (ic, oc, h) in zip(keys, layer_cfg)]

    out = gdp_model2_forward(x, adj_bias, eattr, layer_cfg, params)
    out = jax.block_until_ready(out)

    assert out.shape == (B, N, num_class)
    assert bool(jnp.all(jnp.isfinite(out)))
    assert bool(jnp.all((out >= 0.0) & (out <= 1.0)))   # sigmoid output range

    ref = jax.vmap(
        lambda xb, ab, eb: reference_forward(xb, ab, eb, layer_cfg, params)
    )(x, adj_bias, eattr)
    assert bool(jnp.allclose(out, ref, atol=2e-3, rtol=2e-3))

    print("KERNEL_OK")
</pallas_src>

<mosaic_0001>
module attributes {stable_mosaic.version = 11 : i64} {
  func.func @kernel(%arg0: i32, %arg1: memref<1x16x8xf32, #tpu.memory_space<vmem>>, %arg2: memref<1x16x16xf32, #tpu.memory_space<vmem>>, %arg3: memref<1x16x16xf32, #tpu.memory_space<vmem>>, %arg4: memref<8x16xf32, #tpu.memory_space<vmem>>, %arg5: memref<16x2xf32, #tpu.memory_space<vmem>>, %arg6: memref<16x2xf32, #tpu.memory_space<vmem>>, %arg7: memref<1x2xf32, #tpu.memory_space<vmem>>, %arg8: memref<1x16xf32, #tpu.memory_space<vmem>>, %arg9: memref<16x16xf32, #tpu.memory_space<vmem>>, %arg10: memref<16x2xf32, #tpu.memory_space<vmem>>, %arg11: memref<16x2xf32, #tpu.memory_space<vmem>>, %arg12: memref<1x2xf32, #tpu.memory_space<vmem>>, %arg13: memref<1x16xf32, #tpu.memory_space<vmem>>, %arg14: memref<16x128xf32, #tpu.memory_space<vmem>>, %arg15: memref<128x1xf32, #tpu.memory_space<vmem>>, %arg16: memref<128x1xf32, #tpu.memory_space<vmem>>, %arg17: memref<1x1xf32, #tpu.memory_space<vmem>>, %arg18: memref<1x128xf32, #tpu.memory_space<vmem>>, %arg19: memref<1x16x128xf32, #tpu.memory_space<vmem>>) attributes {dimension_semantics = [#tpu.dimension_semantics<parallel>], iteration_bounds = array<i64: 2>, scalar_prefetch = 0 : i64, scratch_operands = 0 : i64, tpu.core_type = #tpu.core_type<tc>, window_params = [{transform_indices = @transform_0, window_bounds = array<i64: 1, 16, 8>}, {transform_indices = @transform_1, window_bounds = array<i64: 1, 16, 16>}, {transform_indices = @transform_2, window_bounds = array<i64: 1, 16, 16>}, {pipeline_mode = #tpu.pipeline_mode<synchronous>, transform_indices = @transform_3, window_bounds = array<i64: 8, 16>}, {pipeline_mode = #tpu.pipeline_mode<synchronous>, transform_indices = @transform_4, window_bounds = array<i64: 16, 2>}, {pipeline_mode = #tpu.pipeline_mode<synchronous>, transform_indices = @transform_5, window_bounds = array<i64: 16, 2>}, {pipeline_mode = #tpu.pipeline_mode<synchronous>, transform_indices = @transform_6, window_bounds = array<i64: 1, 2>}, {pipeline_mode = #tpu.pipeline_mode<synchronous>, transform_indices = @transform_7, window_bounds = array<i64: 1, 16>}, {pipeline_mode = #tpu.pipeline_mode<synchronous>, transform_indices = @transform_8, window_bounds = array<i64: 16, 16>}, {pipeline_mode = #tpu.pipeline_mode<synchronous>, transform_indices = @transform_9, window_bounds = array<i64: 16, 2>}, {pipeline_mode = #tpu.pipeline_mode<synchronous>, transform_indices = @transform_10, window_bounds = array<i64: 16, 2>}, {pipeline_mode = #tpu.pipeline_mode<synchronous>, transform_indices = @transform_11, window_bounds = array<i64: 1, 2>}, {pipeline_mode = #tpu.pipeline_mode<synchronous>, transform_indices = @transform_12, window_bounds = array<i64: 1, 16>}, {pipeline_mode = #tpu.pipeline_mode<synchronous>, transform_indices = @transform_13, window_bounds = array<i64: 16, 128>}, {pipeline_mode = #tpu.pipeline_mode<synchronous>, transform_indices = @transform_14, window_bounds = array<i64: 128, 1>}, {pipeline_mode = #tpu.pipeline_mode<synchronous>, transform_indices = @transform_15, window_bounds = array<i64: 128, 1>}, {pipeline_mode = #tpu.pipeline_mode<synchronous>, transform_indices = @transform_16, window_bounds = array<i64: 1, 1>}, {pipeline_mode = #tpu.pipeline_mode<synchronous>, transform_indices = @transform_17, window_bounds = array<i64: 1, 128>}, {transform_indices = @transform_18, window_bounds = array<i64: 1, 16, 128>}]} {
    %c0 = arith.constant 0 : index
    %c0_0 = arith.constant 0 : index
    %c0_1 = arith.constant 0 : index
    %0 = vector.load %arg2[%c0, %c0_0, %c0_1] : memref<1x16x16xf32, #tpu.memory_space<vmem>>, vector<1x16x16xf32>
    %1 = vector.shape_cast %0 : vector<1x16x16xf32> to vector<16x16xf32>
    %c0_2 = arith.constant 0 : index
    %c0_3 = arith.constant 0 : index
    %c0_4 = arith.constant 0 : index
    %2 = vector.load %arg3[%c0_2, %c0_3, %c0_4] : memref<1x16x16xf32, #tpu.memory_space<vmem>>, vector<1x16x16xf32>
    %3 = vector.shape_cast %2 : vector<1x16x16xf32> to vector<16x16xf32>
    %c0_5 = arith.constant 0 : index
    %c0_6 = arith.constant 0 : index
    %c0_7 = arith.constant 0 : index
    %4 = vector.load %arg1[%c0_5, %c0_6, %c0_7] : memref<1x16x8xf32, #tpu.memory_space<vmem>>, vector<1x16x8xf32>
    %5 = vector.shape_cast %4 : vector<1x16x8xf32> to vector<16x8xf32>
    %c0_8 = arith.constant 0 : index
    %c0_9 = arith.constant 0 : index
    %6 = vector.load %arg4[%c0_8, %c0_9] : memref<8x16xf32, #tpu.memory_space<vmem>>, vector<8x16xf32>
    %cst = arith.constant dense<0.000000e+00> : vector<16x16xf32>
    %7 = tpu.matmul %5, %6, %cst {dimension_numbers = #tpu.dot_dimension_numbers<[1], [0], [0], [1], [0, 0, 1, 1], [], []>} : vector<16x8xf32>, vector<8x16xf32>, vector<16x16xf32> -> vector<16x16xf32>
    %c0_10 = arith.constant 0 : index
    %c0_11 = arith.constant 0 : index
    %8 = vector.load %arg6[%c0_10, %c0_11] : memref<16x2xf32, #tpu.memory_space<vmem>>, vector<16x2xf32>
    %cst_12 = arith.constant dense<0.000000e+00> : vector<16x2xf32>
    %9 = tpu.matmul %7, %8, %cst_12 {dimension_numbers = #tpu.dot_dimension_numbers<[1], [0], [0], [1], [0, 0, 1, 1], [], []>} : vector<16x16xf32>, vector<16x2xf32>, vector<16x2xf32> -> vector<16x2xf32>
    %c0_13 = arith.constant 0 : index
    %c0_14 = arith.constant 0 : index
    %10 = vector.load %arg5[%c0_13, %c0_14] : memref<16x2xf32, #tpu.memory_space<vmem>>, vector<16x2xf32>
    %cst_15 = arith.constant dense<0.000000e+00> : vector<2x16xf32>
    %11 = tpu.matmul %10, %7, %cst_15 {dimension_numbers = #tpu.dot_dimension_numbers<[0], [1], [1], [0], [0, 1, 1, 0], [], []>} : vector<16x2xf32>, vector<16x16xf32>, vector<2x16xf32> -> vector<2x16xf32>
    %c0_16 = arith.constant 0 : index
    %c0_17 = arith.constant 0 : index
    %12 = vector.load %arg7[%c0_16, %c0_17] : memref<1x2xf32, #tpu.memory_space<vmem>>, vector<1x2xf32>
    %c0_18 = arith.constant 0 : index
    %c0_19 = arith.constant 0 : index
    %13 = vector.load %arg8[%c0_18, %c0_19] : memref<1x16xf32, #tpu.memory_space<vmem>>, vector<1x16xf32>
    %14 = vector.extract_strided_slice %9 {offsets = [0, 0], sizes = [16, 1], strides = [1, 1]} : vector<16x2xf32> to vector<16x1xf32>
    %15 = vector.extract_strided_slice %11 {offsets = [0, 0], sizes = [1, 16], strides = [1, 1]} : vector<2x16xf32> to vector<1x16xf32>
    %16 = vector.broadcast %14 : vector<16x1xf32> to vector<16x16xf32>
    %17 = vector.broadcast %15 : vector<1x16xf32> to vector<16x16xf32>
    %18 = arith.addf %16, %17 : vector<16x16xf32>
    %19 = vector.extract_strided_slice %12 {offsets = [0, 0], sizes = [1, 1], strides = [1, 1]} : vector<1x2xf32> to vector<1x1xf32>
    %20 = vector.broadcast %19 : vector<1x1xf32> to vector<16x16xf32>
    %21 = arith.mulf %3, %20 : vector<16x16xf32>
    %22 = arith.addf %18, %21 : vector<16x16xf32>
    %cst_20 = arith.constant 2.000000e-01 : f32
    %23 = vector.broadcast %cst_20 : f32 to vector<16x16xf32>
    %24 = arith.mulf %23, %22 : vector<16x16xf32>
    %25 = arith.maximumf %22, %24 : vector<16x16xf32>
    %26 = arith.addf %25, %1 : vector<16x16xf32>
    %cst_21 = arith.constant dense<0xFF800000> : vector<16xf32>
    %27 = vector.multi_reduction <maximumf>, %26, %cst_21 [1] : vector<16x16xf32> to vector<16xf32>
    %28 = vector.shape_cast %27 : vector<16xf32> to vector<16x1xf32>
    %29 = vector.broadcast %28 : vector<16x1xf32> to vector<16x16xf32>
    %30 = arith.subf %26, %29 : vector<16x16xf32>
    %31 = math.exp %30 : vector<16x16xf32>
    %cst_22 = arith.constant dense<0.000000e+00> : vector<16xf32>
    %32 = vector.multi_reduction <add>, %31, %cst_22 [1] : vector<16x16xf32> to vector<16xf32>
    %33 = vector.shape_cast %32 : vector<16xf32> to vector<16x1xf32>
    %34 = vector.extract_strided_slice %7 {offsets = [0, 0], sizes = [16, 8], strides = [1, 1]} : vector<16x16xf32> to vector<16x8xf32>
    %cst_23 = arith.constant dense<0.000000e+00> : vector<16x8xf32>
    %35 = tpu.matmul %31, %34, %cst_23 {dimension_numbers = #tpu.dot_dimension_numbers<[1], [0], [0], [1], [0, 0, 1, 1], [], []>} : vector<16x16xf32>, vector<16x8xf32>, vector<16x8xf32> -> vector<16x8xf32>
    %36 = tpu.reciprocal %33 : vector<16x1xf32> -> vector<16x1xf32>
    %37 = vector.broadcast %36 : vector<16x1xf32> to vector<16x8xf32>
    %38 = arith.mulf %35, %37 : vector<16x8xf32>
    %39 = vector.extract_strided_slice %13 {offsets = [0, 0], sizes = [1, 8], strides = [1, 1]} : vector<1x16xf32> to vector<1x8xf32>
    %40 = vector.broadcast %39 : vector<1x8xf32> to vector<16x8xf32>
    %41 = arith.addf %38, %40 : vector<16x8xf32>
    %42 = math.tanh %41 : vector<16x8xf32>
    %43 = vector.extract_strided_slice %9 {offsets = [0, 1], sizes = [16, 1], strides = [1, 1]} : vector<16x2xf32> to vector<16x1xf32>
    %44 = vector.extract_strided_slice %11 {offsets = [1, 0], sizes = [1, 16], strides = [1, 1]} : vector<2x16xf32> to vector<1x16xf32>
    %45 = vector.broadcast %43 : vector<16x1xf32> to vector<16x16xf32>
    %46 = vector.broadcast %44 : vector<1x16xf32> to vector<16x16xf32>
    %47 = arith.addf %45, %46 : vector<16x16xf32>
    %48 = vector.extract_strided_slice %12 {offsets = [0, 1], sizes = [1, 1], strides = [1, 1]} : vector<1x2xf32> to vector<1x1xf32>
    %49 = vector.broadcast %48 : vector<1x1xf32> to vector<16x16xf32>
    %50 = arith.mulf %3, %49 : vector<16x16xf32>
    %51 = arith.addf %47, %50 : vector<16x16xf32>
    %cst_24 = arith.constant 2.000000e-01 : f32
    %52 = vector.broadcast %cst_24 : f32 to vector<16x16xf32>
    %53 = arith.mulf %52, %51 : vector<16x16xf32>
    %54 = arith.maximumf %51, %53 : vector<16x16xf32>
    %55 = arith.addf %54, %1 : vector<16x16xf32>
    %cst_25 = arith.constant dense<0xFF800000> : vector<16xf32>
    %56 = vector.multi_reduction <maximumf>, %55, %cst_25 [1] : vector<16x16xf32> to vector<16xf32>
    %57 = vector.shape_cast %56 : vector<16xf32> to vector<16x1xf32>
    %58 = vector.broadcast %57 : vector<16x1xf32> to vector<16x16xf32>
    %59 = arith.subf %55, %58 : vector<16x16xf32>
    %60 = math.exp %59 : vector<16x16xf32>
    %cst_26 = arith.constant dense<0.000000e+00> : vector<16xf32>
    %61 = vector.multi_reduction <add>, %60, %cst_26 [1] : vector<16x16xf32> to vector<16xf32>
    %62 = vector.shape_cast %61 : vector<16xf32> to vector<16x1xf32>
    %63 = vector.extract_strided_slice %7 {offsets = [0, 8], sizes = [16, 8], strides = [1, 1]} : vector<16x16xf32> to vector<16x8xf32>
    %cst_27 = arith.constant dense<0.000000e+00> : vector<16x8xf32>
    %64 = tpu.matmul %60, %63, %cst_27 {dimension_numbers = #tpu.dot_dimension_numbers<[1], [0], [0], [1], [0, 0, 1, 1], [], []>} : vector<16x16xf32>, vector<16x8xf32>, vector<16x8xf32> -> vector<16x8xf32>
    %65 = tpu.reciprocal %62 : vector<16x1xf32> -> vector<16x1xf32>
    %66 = vector.broadcast %65 : vector<16x1xf32> to vector<16x8xf32>
    %67 = arith.mulf %64, %66 : vector<16x8xf32>
    %68 = vector.extract_strided_slice %13 {offsets = [0, 8], sizes = [1, 8], strides = [1, 1]} : vector<1x16xf32> to vector<1x8xf32>
    %69 = vector.broadcast %68 : vector<1x8xf32> to vector<16x8xf32>
    %70 = arith.addf %67, %69 : vector<16x8xf32>
    %71 = math.tanh %70 : vector<16x8xf32>
    %c0_28 = arith.constant 0 : index
    %c0_29 = arith.constant 0 : index
    %72 = vector.load %arg9[%c0_28, %c0_29] : memref<16x16xf32, #tpu.memory_space<vmem>>, vector<8x16xf32>
    %cst_30 = arith.constant dense<0.000000e+00> : vector<16x16xf32>
    %73 = tpu.matmul %42, %72, %cst_30 {dimension_numbers = #tpu.dot_dimension_numbers<[1], [0], [0], [1], [0, 0, 1, 1], [], []>} : vector<16x8xf32>, vector<8x16xf32>, vector<16x16xf32> -> vector<16x16xf32>
    %c8 = arith.constant 8 : index
    %c0_31 = arith.constant 0 : index
    %74 = vector.load %arg9[%c8, %c0_31] : memref<16x16xf32, #tpu.memory_space<vmem>>, vector<8x16xf32>
    %cst_32 = arith.constant dense<0.000000e+00> : vector<16x16xf32>
    %75 = tpu.matmul %71, %74, %cst_32 {dimension_numbers = #tpu.dot_dimension_numbers<[1], [0], [0], [1], [0, 0, 1, 1], [], []>} : vector<16x8xf32>, vector<8x16xf32>, vector<16x16xf32> -> vector<16x16xf32>
    %76 = arith.addf %73, %75 : vector<16x16xf32>
    %c0_33 = arith.constant 0 : index
    %c0_34 = arith.constant 0 : index
    %77 = vector.load %arg11[%c0_33, %c0_34] : memref<16x2xf32, #tpu.memory_space<vmem>>, vector<16x2xf32>
    %cst_35 = arith.constant dense<0.000000e+00> : vector<16x2xf32>
    %78 = tpu.matmul %76, %77, %cst_35 {dimension_numbers = #tpu.dot_dimension_numbers<[1], [0], [0], [1], [0, 0, 1, 1], [], []>} : vector<16x16xf32>, vector<16x2xf32>, vector<16x2xf32> -> vector<16x2xf32>
    %c0_36 = arith.constant 0 : index
    %c0_37 = arith.constant 0 : index
    %79 = vector.load %arg10[%c0_36, %c0_37] : memref<16x2xf32, #tpu.memory_space<vmem>>, vector<16x2xf32>
    %cst_38 = arith.constant dense<0.000000e+00> : vector<2x16xf32>
    %80 = tpu.matmul %79, %76, %cst_38 {dimension_numbers = #tpu.dot_dimension_numbers<[0], [1], [1], [0], [0, 1, 1, 0], [], []>} : vector<16x2xf32>, vector<16x16xf32>, vector<2x16xf32> -> vector<2x16xf32>
    %c0_39 = arith.constant 0 : index
    %c0_40 = arith.constant 0 : index
    %81 = vector.load %arg12[%c0_39, %c0_40] : memref<1x2xf32, #tpu.memory_space<vmem>>, vector<1x2xf32>
    %c0_41 = arith.constant 0 : index
    %c0_42 = arith.constant 0 : index
    %82 = vector.load %arg13[%c0_41, %c0_42] : memref<1x16xf32, #tpu.memory_space<vmem>>, vector<1x16xf32>
    %83 = vector.extract_strided_slice %78 {offsets = [0, 0], sizes = [16, 1], strides = [1, 1]} : vector<16x2xf32> to vector<16x1xf32>
    %84 = vector.extract_strided_slice %80 {offsets = [0, 0], sizes = [1, 16], strides = [1, 1]} : vector<2x16xf32> to vector<1x16xf32>
    %85 = vector.broadcast %83 : vector<16x1xf32> to vector<16x16xf32>
    %86 = vector.broadcast %84 : vector<1x16xf32> to vector<16x16xf32>
    %87 = arith.addf %85, %86 : vector<16x16xf32>
    %88 = vector.extract_strided_slice %81 {offsets = [0, 0], sizes = [1, 1], strides = [1, 1]} : vector<1x2xf32> to vector<1x1xf32>
    %89 = vector.broadcast %88 : vector<1x1xf32> to vector<16x16xf32>
    %90 = arith.mulf %3, %89 : vector<16x16xf32>
    %91 = arith.addf %87, %90 : vector<16x16xf32>
    %cst_43 = arith.constant 2.000000e-01 : f32
    %92 = vector.broadcast %cst_43 : f32 to vector<16x16xf32>
    %93 = arith.mulf %92, %91 : vector<16x16xf32>
    %94 = arith.maximumf %91, %93 : vector<16x16xf32>
    %95 = arith.addf %94, %1 : vector<16x16xf32>
    %cst_44 = arith.constant dense<0xFF800000> : vector<16xf32>
    %96 = vector.multi_reduction <maximumf>, %95, %cst_44 [1] : vector<16x16xf32> to vector<16xf32>
    %97 = vector.shape_cast %96 : vector<16xf32> to vector<16x1xf32>
    %98 = vector.broadcast %97 : vector<16x1xf32> to vector<16x16xf32>
    %99 = arith.subf %95, %98 : vector<16x16xf32>
    %100 = math.exp %99 : vector<16x16xf32>
    %cst_45 = arith.constant dense<0.000000e+00> : vector<16xf32>
    %101 = vector.multi_reduction <add>, %100, %cst_45 [1] : vector<16x16xf32> to vector<16xf32>
    %102 = vector.shape_cast %101 : vector<16xf32> to vector<16x1xf32>
    %103 = vector.extract_strided_slice %76 {offsets = [0, 0], sizes = [16, 8], strides = [1, 1]} : vector<16x16xf32> to vector<16x8xf32>
    %cst_46 = arith.constant dense<0.000000e+00> : vector<16x8xf32>
    %104 = tpu.matmul %100, %103, %cst_46 {dimension_numbers = #tpu.dot_dimension_numbers<[1], [0], [0], [1], [0, 0, 1, 1], [], []>} : vector<16x16xf32>, vector<16x8xf32>, vector<16x8xf32> -> vector<16x8xf32>
    %105 = tpu.reciprocal %102 : vector<16x1xf32> -> vector<16x1xf32>
    %106 = vector.broadcast %105 : vector<16x1xf32> to vector<16x8xf32>
    %107 = arith.mulf %104, %106 : vector<16x8xf32>
    %108 = vector.extract_strided_slice %82 {offsets = [0, 0], sizes = [1, 8], strides = [1, 1]} : vector<1x16xf32> to vector<1x8xf32>
    %109 = vector.broadcast %108 : vector<1x8xf32> to vector<16x8xf32>
    %110 = arith.addf %107, %109 : vector<16x8xf32>
    %111 = math.tanh %110 : vector<16x8xf32>
    %112 = vector.extract_strided_slice %78 {offsets = [0, 1], sizes = [16, 1], strides = [1, 1]} : vector<16x2xf32> to vector<16x1xf32>
    %113 = vector.extract_strided_slice %80 {offsets = [1, 0], sizes = [1, 16], strides = [1, 1]} : vector<2x16xf32> to vector<1x16xf32>
    %114 = vector.broadcast %112 : vector<16x1xf32> to vector<16x16xf32>
    %115 = vector.broadcast %113 : vector<1x16xf32> to vector<16x16xf32>
    %116 = arith.addf %114, %115 : vector<16x16xf32>
    %117 = vector.extract_strided_slice %81 {offsets = [0, 1], sizes = [1, 1], strides = [1, 1]} : vector<1x2xf32> to vector<1x1xf32>
    %118 = vector.broadcast %117 : vector<1x1xf32> to vector<16x16xf32>
    %119 = arith.mulf %3, %118 : vector<16x16xf32>
    %120 = arith.addf %116, %119 : vector<16x16xf32>
    %cst_47 = arith.constant 2.000000e-01 : f32
    %121 = vector.broadcast %cst_47 : f32 to vector<16x16xf32>
    %122 = arith.mulf %121, %120 : vector<16x16xf32>
    %123 = arith.maximumf %120, %122 : vector<16x16xf32>
    %124 = arith.addf %123, %1 : vector<16x16xf32>
    %cst_48 = arith.constant dense<0xFF800000> : vector<16xf32>
    %125 = vector.multi_reduction <maximumf>, %124, %cst_48 [1] : vector<16x16xf32> to vector<16xf32>
    %126 = vector.shape_cast %125 : vector<16xf32> to vector<16x1xf32>
    %127 = vector.broadcast %126 : vector<16x1xf32> to vector<16x16xf32>
    %128 = arith.subf %124, %127 : vector<16x16xf32>
    %129 = math.exp %128 : vector<16x16xf32>
    %cst_49 = arith.constant dense<0.000000e+00> : vector<16xf32>
    %130 = vector.multi_reduction <add>, %129, %cst_49 [1] : vector<16x16xf32> to vector<16xf32>
    %131 = vector.shape_cast %130 : vector<16xf32> to vector<16x1xf32>
    %132 = vector.extract_strided_slice %76 {offsets = [0, 8], sizes = [16, 8], strides = [1, 1]} : vector<16x16xf32> to vector<16x8xf32>
    %cst_50 = arith.constant dense<0.000000e+00> : vector<16x8xf32>
    %133 = tpu.matmul %129, %132, %cst_50 {dimension_numbers = #tpu.dot_dimension_numbers<[1], [0], [0], [1], [0, 0, 1, 1], [], []>} : vector<16x16xf32>, vector<16x8xf32>, vector<16x8xf32> -> vector<16x8xf32>
    %134 = tpu.reciprocal %131 : vector<16x1xf32> -> vector<16x1xf32>
    %135 = vector.broadcast %134 : vector<16x1xf32> to vector<16x8xf32>
    %136 = arith.mulf %133, %135 : vector<16x8xf32>
    %137 = vector.extract_strided_slice %82 {offsets = [0, 8], sizes = [1, 8], strides = [1, 1]} : vector<1x16xf32> to vector<1x8xf32>
    %138 = vector.broadcast %137 : vector<1x8xf32> to vector<16x8xf32>
    %139 = arith.addf %136, %138 : vector<16x8xf32>
    %140 = math.tanh %139 : vector<16x8xf32>
    %c0_51 = arith.constant 0 : index
    %c0_52 = arith.constant 0 : index
    %141 = vector.load %arg14[%c0_51, %c0_52] : memref<16x128xf32, #tpu.memory_space<vmem>>, vector<8x128xf32>
    %cst_53 = arith.constant dense<0.000000e+00> : vector<16x128xf32>
    %142 = tpu.matmul %111, %141, %cst_53 {dimension_numbers = #tpu.dot_dimension_numbers<[1], [0], [0], [1], [0, 0, 1, 1], [], []>} : vector<16x8xf32>, vector<8x128xf32>, vector<16x128xf32> -> vector<16x128xf32>
    %c8_54 = arith.constant 8 : index
    %c0_55 = arith.constant 0 : index
    %143 = vector.load %arg14[%c8_54, %c0_55] : memref<16x128xf32, #tpu.memory_space<vmem>>, vector<8x128xf32>
    %cst_56 = arith.constant dense<0.000000e+00> : vector<16x128xf32>
    %144 = tpu.matmul %140, %143, %cst_56 {dimension_numbers = #tpu.dot_dimension_numbers<[1], [0], [0], [1], [0, 0, 1, 1], [], []>} : vector<16x8xf32>, vector<8x128xf32>, vector<16x128xf32> -> vector<16x128xf32>
    %145 = arith.addf %142, %144 : vector<16x128xf32>
    %c0_57 = arith.constant 0 : index
    %c0_58 = arith.constant 0 : index
    %146 = vector.load %arg16[%c0_57, %c0_58] : memref<128x1xf32, #tpu.memory_space<vmem>>, vector<128x1xf32>
    %cst_59 = arith.constant dense<0.000000e+00> : vector<16x1xf32>
    %147 = tpu.matmul %145, %146, %cst_59 {dimension_numbers = #tpu.dot_dimension_numbers<[1], [0], [0], [1], [0, 0, 1, 1], [], []>} : vector<16x128xf32>, vector<128x1xf32>, vector<16x1xf32> -> vector<16x1xf32>
    %c0_60 = arith.constant 0 : index
    %c0_61 = arith.constant 0 : index
    %148 = vector.load %arg15[%c0_60, %c0_61] : memref<128x1xf32, #tpu.memory_space<vmem>>, vector<128x1xf32>
    %cst_62 = arith.constant dense<0.000000e+00> : vector<1x16xf32>
    %149 = tpu.matmul %148, %145, %cst_62 {dimension_numbers = #tpu.dot_dimension_numbers<[0], [1], [1], [0], [0, 1, 1, 0], [], []>} : vector<128x1xf32>, vector<16x128xf32>, vector<1x16xf32> -> vector<1x16xf32>
    %c0_63 = arith.constant 0 : index
    %c0_64 = arith.constant 0 : index
    %150 = vector.load %arg17[%c0_63, %c0_64] : memref<1x1xf32, #tpu.memory_space<vmem>>, vector<1x1xf32>
    %c0_65 = arith.constant 0 : index
    %c0_66 = arith.constant 0 : index
    %151 = vector.load %arg18[%c0_65, %c0_66] : memref<1x128xf32, #tpu.memory_space<vmem>>, vector<1x128xf32>
    %152 = vector.broadcast %147 : vector<16x1xf32> to vector<16x16xf32>
    %153 = vector.broadcast %149 : vector<1x16xf32> to vector<16x16xf32>
    %154 = arith.addf %152, %153 : vector<16x16xf32>
    %155 = vector.broadcast %150 : vector<1x1xf32> to vector<16x16xf32>
    %156 = arith.mulf %3, %155 : vector<16x16xf32>
    %157 = arith.addf %154, %156 : vector<16x16xf32>
    %cst_67 = arith.constant 2.000000e-01 : f32
    %158 = vector.broadcast %cst_67 : f32 to vector<16x16xf32>
    %159 = arith.mulf %158, %157 : vector<16x16xf32>
    %160 = arith.maximumf %157, %159 : vector<16x16xf32>
    %161 = arith.addf %160, %1 : vector<16x16xf32>
    %cst_68 = arith.constant dense<0xFF800000> : vector<16xf32>
    %162 = vector.multi_reduction <maximumf>, %161, %cst_68 [1] : vector<16x16xf32> to vector<16xf32>
    %163 = vector.shape_cast %162 : vector<16xf32> to vector<16x1xf32>
    %164 = vector.broadcast %163 : vector<16x1xf32> to vector<16x16xf32>
    %165 = arith.subf %161, %164 : vector<16x16xf32>
    %166 = math.exp %165 : vector<16x16xf32>
    %cst_69 = arith.constant dense<0.000000e+00> : vector<16xf32>
    %167 = vector.multi_reduction <add>, %166, %cst_69 [1] : vector<16x16xf32> to vector<16xf32>
    %168 = vector.shape_cast %167 : vector<16xf32> to vector<16x1xf32>
    %cst_70 = arith.constant dense<0.000000e+00> : vector<16x128xf32>
    %169 = tpu.matmul %166, %145, %cst_70 {dimension_numbers = #tpu.dot_dimension_numbers<[1], [0], [0], [1], [0, 0, 1, 1], [], []>} : vector<16x16xf32>, vector<16x128xf32>, vector<16x128xf32> -> vector<16x128xf32>
    %170 = tpu.reciprocal %168 : vector<16x1xf32> -> vector<16x1xf32>
    %171 = vector.broadcast %170 : vector<16x1xf32> to vector<16x128xf32>
    %172 = arith.mulf %169, %171 : vector<16x128xf32>
    %173 = vector.broadcast %151 : vector<1x128xf32> to vector<16x128xf32>
    %174 = arith.addf %172, %173 : vector<16x128xf32>
    %175 = math.tanh %174 : vector<16x128xf32>
    %176 = arith.negf %175 : vector<16x128xf32>
    %177 = math.exp %176 : vector<16x128xf32>
    %cst_71 = arith.constant 1.000000e+00 : f32
    %178 = vector.broadcast %cst_71 : f32 to vector<16x128xf32>
    %179 = arith.addf %178, %177 : vector<16x128xf32>
    %180 = arith.divf %178, %179 : vector<16x128xf32>
    %c0_72 = arith.constant 0 : index
    %c0_73 = arith.constant 0 : index
    %c0_74 = arith.constant 0 : index
    %181 = vector.load %arg19[%c0_72, %c0_73, %c0_74] : memref<1x16x128xf32, #tpu.memory_space<vmem>>, vector<1x16x128xf32>
    %182 = vector.shape_cast %181 : vector<1x16x128xf32> to vector<16x128xf32>
    %183 = vector.shape_cast %180 : vector<16x128xf32> to vector<1x16x128xf32>
    tpu.vector_store %arg19[%c0_72, %c0_73, %c0_74], %183 {strides = array<i32>} : memref<1x16x128xf32, #tpu.memory_space<vmem>>, vector<1x16x128xf32>,
    return
  }
  func.func @transform_0(%arg0: i32) -> (i32, i32, i32) {
    %c0_i32 = arith.constant 0 : i32
    %c0_i32_0 = arith.constant 0 : i32
    %c0_i32_1 = arith.constant 0 : i32
    return %arg0, %c0_i32, %c0_i32_0 : i32, i32, i32
  }
  func.func @transform_1(%arg0: i32) -> (i32, i32, i32) {
    %c0_i32 = arith.constant 0 : i32
    %c0_i32_0 = arith.constant 0 : i32
    %c0_i32_1 = arith.constant 0 : i32
    return %arg0, %c0_i32, %c0_i32_0 : i32, i32, i32
  }
  func.func @transform_2(%arg0: i32) -> (i32, i32, i32) {
    %c0_i32 = arith.constant 0 : i32
    %c0_i32_0 = arith.constant 0 : i32
    %c0_i32_1 = arith.constant 0 : i32
    return %arg0, %c0_i32, %c0_i32_0 : i32, i32, i32
  }
  func.func @transform_3(%arg0: i32) -> (i32, i32) {
    %c0_i32 = arith.constant 0 : i32
    %c0_i32_0 = arith.constant 0 : i32
    %c0_i32_1 = arith.constant 0 : i32
    return %c0_i32, %c0_i32_0 : i32, i32
  }
  func.func @transform_4(%arg0: i32) -> (i32, i32) {
    %c0_i32 = arith.constant 0 : i32
    %c0_i32_0 = arith.constant 0 : i32
    %c0_i32_1 = arith.constant 0 : i32
    return %c0_i32, %c0_i32_0 : i32, i32
  }
  func.func @transform_5(%arg0: i32) -> (i32, i32) {
    %c0_i32 = arith.constant 0 : i32
    %c0_i32_0 = arith.constant 0 : i32
    %c0_i32_1 = arith.constant 0 : i32
    return %c0_i32, %c0_i32_0 : i32, i32
  }
  func.func @transform_6(%arg0: i32) -> (i32, i32) {
    %c0_i32 = arith.constant 0 : i32
    %c0_i32_0 = arith.constant 0 : i32
    %c0_i32_1 = arith.constant 0 : i32
    return %c0_i32, %c0_i32_0 : i32, i32
  }
  func.func @transform_7(%arg0: i32) -> (i32, i32) {
    %c0_i32 = arith.constant 0 : i32
    %c0_i32_0 = arith.constant 0 : i32
    %c0_i32_1 = arith.constant 0 : i32
    return %c0_i32, %c0_i32_0 : i32, i32
  }
  func.func @transform_8(%arg0: i32) -> (i32, i32) {
    %c0_i32 = arith.constant 0 : i32
    %c0_i32_0 = arith.constant 0 : i32
    %c0_i32_1 = arith.constant 0 : i32
    return %c0_i32, %c0_i32_0 : i32, i32
  }
  func.func @transform_9(%arg0: i32) -> (i32, i32) {
    %c0_i32 = arith.constant 0 : i32
    %c0_i32_0 = arith.constant 0 : i32
    %c0_i32_1 = arith.constant 0 : i32
    return %c0_i32, %c0_i32_0 : i32, i32
  }
  func.func @transform_10(%arg0: i32) -> (i32, i32) {
    %c0_i32 = arith.constant 0 : i32
    %c0_i32_0 = arith.constant 0 : i32
    %c0_i32_1 = arith.constant 0 : i32
    return %c0_i32, %c0_i32_0 : i32, i32
  }
  func.func @transform_11(%arg0: i32) -> (i32, i32) {
    %c0_i32 = arith.constant 0 : i32
    %c0_i32_0 = arith.constant 0 : i32
    %c0_i32_1 = arith.constant 0 : i32
    return %c0_i32, %c0_i32_0 : i32, i32
  }
  func.func @transform_12(%arg0: i32) -> (i32, i32) {
    %c0_i32 = arith.constant 0 : i32
    %c0_i32_0 = arith.constant 0 : i32
    %c0_i32_1 = arith.constant 0 : i32
    return %c0_i32, %c0_i32_0 : i32, i32
  }
  func.func @transform_13(%arg0: i32) -> (i32, i32) {
    %c0_i32 = arith.constant 0 : i32
    %c0_i32_0 = arith.constant 0 : i32
    %c0_i32_1 = arith.constant 0 : i32
    return %c0_i32, %c0_i32_0 : i32, i32
  }
  func.func @transform_14(%arg0: i32) -> (i32, i32) {
    %c0_i32 = arith.constant 0 : i32
    %c0_i32_0 = arith.constant 0 : i32
    %c0_i32_1 = arith.constant 0 : i32
    return %c0_i32, %c0_i32_0 : i32, i32
  }
  func.func @transform_15(%arg0: i32) -> (i32, i32) {
    %c0_i32 = arith.constant 0 : i32
    %c0_i32_0 = arith.constant 0 : i32
    %c0_i32_1 = arith.constant 0 : i32
    return %c0_i32, %c0_i32_0 : i32, i32
  }
  func.func @transform_16(%arg0: i32) -> (i32, i32) {
    %c0_i32 = arith.constant 0 : i32
    %c0_i32_0 = arith.constant 0 : i32
    %c0_i32_1 = arith.constant 0 : i32
    return %c0_i32, %c0_i32_0 : i32, i32
  }
  func.func @transform_17(%arg0: i32) -> (i32, i32) {
    %c0_i32 = arith.constant 0 : i32
    %c0_i32_0 = arith.constant 0 : i32
    %c0_i32_1 = arith.constant 0 : i32
    return %c0_i32, %c0_i32_0 : i32, i32
  }
  func.func @transform_18(%arg0: i32) -> (i32, i32, i32) {
    %c0_i32 = arith.constant 0 : i32
    %c0_i32_0 = arith.constant 0 : i32
    %c0_i32_1 = arith.constant 0 : i32
    return %arg0, %c0_i32, %c0_i32_0 : i32, i32, i32
  }
}

</mosaic_0001>

<llo_original>
// kernel: tpu_custom_call.1
$region0: #{tpu_custom_call.1}
  #allocation0 [shape = 'u32[]', space=smem, size = 0x4, offset = 0x4, fixed_abs, tag = 'smem constant byte address 0x4 - core index']
  #allocation1 [shape = 'u32[144,128]{1,0:T(1,128)}', space=vmem, size = 0x12000, scoped, tag = 'internal scratch']
  #allocation2 [shape = 'f32[1,1]{1,0:T(1,128)S(1)}', space=vmem, size = 0x200, scoped, tag = 'scoped memory for tpu_custom_call.1']
  %s0 = inlined_call_operand.vmem [shape: f32[2,16,8], index: 0, kind: input, shape index: {}]
  %s1 = inlined_call_operand.vmem [shape: f32[2,16,16], index: 1, kind: input, shape index: {}]
  %s2 = inlined_call_operand.vmem [shape: f32[2,16,16], index: 2, kind: input, shape index: {}]
  %s3 = inlined_call_operand.vmem [shape: f32[8,16], index: 3, kind: input, shape index: {}]
  %s4 = inlined_call_operand.vmem [shape: f32[16,2], index: 4, kind: input, shape index: {}]
  %s5 = inlined_call_operand.vmem [shape: f32[16,2], index: 5, kind: input, shape index: {}]
  %s6 = inlined_call_operand.vmem [shape: f32[1,2], index: 6, kind: input, shape index: {}]
  %s7 = inlined_call_operand.vmem [shape: f32[1,16], index: 7, kind: input, shape index: {}]
  %s8 = inlined_call_operand.vmem [shape: f32[16,16], index: 8, kind: input, shape index: {}]
  %s9 = inlined_call_operand.vmem [shape: f32[16,2], index: 9, kind: input, shape index: {}]
  %s10 = inlined_call_operand.vmem [shape: f32[16,2], index: 10, kind: input, shape index: {}]
  %s11 = inlined_call_operand.vmem [shape: f32[1,2], index: 11, kind: input, shape index: {}]
  %s12 = inlined_call_operand.vmem [shape: f32[1,16], index: 12, kind: input, shape index: {}]
  %s13 = inlined_call_operand.vmem [shape: f32[16,128], index: 13, kind: input, shape index: {}]
  %s14 = inlined_call_operand.vmem [shape: f32[128,1], index: 14, kind: input, shape index: {}]
  %s15 = inlined_call_operand.vmem [shape: f32[128,1], index: 15, kind: input, shape index: {}]
  %s16 = inlined_call_operand.<no memory space> [shape: f32[1,1], index: 16, kind: input, shape index: {}]
  %s17 = inlined_call_operand.vmem [shape: f32[1,128], index: 17, kind: input, shape index: {}]
  %s18 = inlined_call_operand.hbm [shape: f32[2,16,128], index: 18, kind: output, shape index: {}]
  %s19 = sld [smem:[#allocation0]]
  $region105: #{tpu_custom_call.1} parent=0
    _
  %s21 = ssub.s32 1, %s19
  %s22 = scalar_select 0, %s21, %s19
  %v23 = vstv %s16
  %24 = vst [vmem:[#allocation2] sm:$0x1] %v23
  $region1: #{tpu_custom_call.1} parent=0
    #allocation3 [shape = 'u8[16384]{0}', space=vmem, size = 0x4000, scoped, tag = 'output window, operand 0']
    #allocation4 [shape = 's32[2]{0}', space=sflag, size = 0x8, scoped, tag = 'scoped memory for tpu_custom_call.1']
    %25 = vsyncpa [#allocation4], 0
    %s26 = scalar_lea.sflag [#allocation4], 1
    %27 = vsyncpa %s26, 0
    loop: start=0, step=1, limit=4
    $region2: #{tpu_custom_call.1} parent=1 // loop_pre_header
      _
    $region3: #{tpu_custom_call.1} parent=1 // loop_header
      %s29 = sphi 0, %s33
      %p30 = scmp.ge.s32.totalorder %s29, 4
      %s39 = sphi 0, %s41
      %s42 = sphi 0, %s39
      %s43 = sphi 0, %s42
      %s59 = sphi 0, %s43
      %s65 = sphi 0, %s67
      %s68 = sphi 0, %s65
      %s69 = sphi 0, %s68
      %s85 = sphi 0, %s69
      %s91 = sphi 0, %s93
      %s94 = sphi 0, %s91
      %s95 = sphi 0, %s94
      %s111 = sphi 0, %s95
      %s115 = sphi 0, %s115
      %s117 = sphi 0, %s115
      %s118 = sphi 0, %s117
      %s132 = sphi 0, %s118
      %s136 = sphi 0, %s136
      %s138 = sphi 0, %s136
      %s139 = sphi 0, %s138
      %s153 = sphi 0, %s139
      %s157 = sphi 0, %s157
      %s159 = sphi 0, %s157
      %s160 = sphi 0, %s159
      %s174 = sphi 0, %s160
      %s178 = sphi 0, %s178
      %s180 = sphi 0, %s178
      %s181 = sphi 0, %s180
      %s195 = sphi 0, %s181
      %s199 = sphi 0, %s199
      %s201 = sphi 0, %s199
      %s202 = sphi 0, %s201
      %s216 = sphi 0, %s202
      %s220 = sphi 0, %s220
      %s222 = sphi 0, %s220
      %s223 = sphi 0, %s222
      %s237 = sphi 0, %s223
      %s241 = sphi 0, %s241
      %s243 = sphi 0, %s241
      %s244 = sphi 0, %s243
      %s258 = sphi 0, %s244
      %s262 = sphi 0, %s262
      %s264 = sphi 0, %s262
      %s265 = sphi 0, %s264
      %s279 = sphi 0, %s265
      %s283 = sphi 0, %s283
      %s285 = sphi 0, %s283
      %s286 = sphi 0, %s285
      %s300 = sphi 0, %s286
      %s304 = sphi 0, %s304
      %s306 = sphi 0, %s304
      %s307 = sphi 0, %s306
      %s321 = sphi 0, %s307
      %s325 = sphi 0, %s325
      %s327 = sphi 0, %s325
      %s328 = sphi 0, %s327
      %s342 = sphi 0, %s328
      %s346 = sphi 0, %s346
      %s348 = sphi 0, %s346
      %s349 = sphi 0, %s348
      %s363 = sphi 0, %s349
      %s367 = sphi 0, %s367
      %s369 = sphi 0, %s367
      %s370 = sphi 0, %s369
      %s384 = sphi 0, %s370
      %s388 = sphi 0, %s388
      %s390 = sphi 0, %s388
      %s391 = sphi 0, %s390
      %s405 = sphi 0, %s391
      %s409 = sphi 0, %s409
      %s411 = sphi 0, %s409
      %s412 = sphi 0, %s411
      %s426 = sphi 0, %s412
      %s432 = sphi 0, %s434
      %s435 = sphi 0, %s432
      %s436 = sphi 0, %s435
      %s452 = sphi 0, %s436
    $region4: #{tpu_custom_call.1} parent=1 // loop_header_branch
      %32 = sbr.rel (%p30) target = $region8
    $region5: #{tpu_custom_call.1} parent=1 // loop_body
      %s34 = ssub.s32 %s29, 1
      %s35 = ssub.s32 %s29, 2
      %s36 = sadd.s32 %s29, 1
      %s37 = ssub.s32 %s29, %s36
      %p38 = scmp.eq.s32.totalorder %s37, 0
      %s40 = sadd.s32 %s39, 1
      %s41 = scalar_select %p38, %s39, %s40
      %p44 = pneg %p38
      %p45 = scmp.eq.s32.totalorder %s29, 1
      %p46 = por %p44, %p45
      %p47 = scmp.ne.s32.totalorder %s39, %s42
      %p48 = scmp.eq.s32.totalorder %s29, 0
      %p49 = por %p47, %p48
      %p50 = scmp.ne.s32.totalorder %s39, %s42
      %p51 = scmp.eq.s32.totalorder %s34, 1
      %p52 = por %p50, %p51
      %p53 = scmp.ne.s32.totalorder %s42, %s43
      %p54 = scmp.eq.s32.totalorder %s34, 0
      %p55 = por %p53, %p54
      %p56 = scmp.ne.s32.totalorder %s42, %s43
      %p57 = scmp.eq.s32.totalorder %s35, 1
      %p58 = por %p56, %p57
      %p60 = scmp.ne.s32.totalorder %s43, %s59
      %p61 = scmp.eq.s32.totalorder %s35, 0
      %p62 = por %p60, %p61
      %s63 = ssub.s32 %s29, %s36
      %p64 = scmp.eq.s32.totalorder %s63, 0
      %s66 = sadd.s32 %s65, 1
      %s67 = scalar_select %p64, %s65, %s66
      %p70 = pneg %p64
      %p71 = scmp.eq.s32.totalorder %s29, 1
      %p72 = por %p70, %p71
      %p73 = scmp.ne.s32.totalorder %s65, %s68
      %p74 = scmp.eq.s32.totalorder %s29, 0
      %p75 = por %p73, %p74
      %p76 = scmp.ne.s32.totalorder %s65, %s68
      %p77 = scmp.eq.s32.totalorder %s34, 1
      %p78 = por %p76, %p77
      %p79 = scmp.ne.s32.totalorder %s68, %s69
      %p80 = scmp.eq.s32.totalorder %s34, 0
      %p81 = por %p79, %p80
      %p82 = scmp.ne.s32.totalorder %s68, %s69
      %p83 = scmp.eq.s32.totalorder %s35, 1
      %p84 = por %p82, %p83
      %p86 = scmp.ne.s32.totalorder %s69, %s85
      %p87 = scmp.eq.s32.totalorder %s35, 0
      %p88 = por %p86, %p87
      %s89 = ssub.s32 %s29, %s36
      %p90 = scmp.eq.s32.totalorder %s89, 0
      %s92 = sadd.s32 %s91, 1
      %s93 = scalar_select %p90, %s91, %s92
      %p96 = pneg %p90
      %p97 = scmp.eq.s32.totalorder %s29, 1
      %p98 = por %p96, %p97
      %p99 = scmp.ne.s32.totalorder %s91, %s94
      %p100 = scmp.eq.s32.totalorder %s29, 0
      %p101 = por %p99, %p100
      %p102 = scmp.ne.s32.totalorder %s91, %s94
      %p103 = scmp.eq.s32.totalorder %s34, 1
      %p104 = por %p102, %p103
      %p105 = scmp.ne.s32.totalorder %s94, %s95
      %p106 = scmp.eq.s32.totalorder %s34, 0
      %p107 = por %p105, %p106
      %p108 = scmp.ne.s32.totalorder %s94, %s95
      %p109 = scmp.eq.s32.totalorder %s35, 1
      %p110 = por %p108, %p109
      %p112 = scmp.ne.s32.totalorder %s95, %s111
      %p113 = scmp.eq.s32.totalorder %s35, 0
      %p114 = por %p112, %p113
      %s116 = sadd.s32 %s115, 1
      %p119 = scmp.eq.s32.totalorder %s29, 1
      %p120 = scmp.ne.s32.totalorder %s115, %s117
      %p121 = scmp.eq.s32.totalorder %s29, 0
      %p122 = por %p120, %p121
      %p123 = scmp.ne.s32.totalorder %s115, %s117
      %p124 = scmp.eq.s32.totalorder %s34, 1
      %p125 = por %p123, %p124
      %p126 = scmp.ne.s32.totalorder %s117, %s118
      %p127 = scmp.eq.s32.totalorder %s34, 0
      %p128 = por %p126, %p127
      %p129 = scmp.ne.s32.totalorder %s117, %s118
      %p130 = scmp.eq.s32.totalorder %s35, 1
      %p131 = por %p129, %p130
      %p133 = scmp.ne.s32.totalorder %s118, %s132
      %p134 = scmp.eq.s32.totalorder %s35, 0
      %p135 = por %p133, %p134
      %s137 = sadd.s32 %s136, 1
      %p140 = scmp.eq.s32.totalorder %s29, 1
      %p141 = scmp.ne.s32.totalorder %s136, %s138
      %p142 = scmp.eq.s32.totalorder %s29, 0
      %p143 = por %p141, %p142
      %p144 = scmp.ne.s32.totalorder %s136, %s138
      %p145 = scmp.eq.s32.totalorder %s34, 1
      %p146 = por %p144, %p145
      %p147 = scmp.ne.s32.totalorder %s138, %s139
      %p148 = scmp.eq.s32.totalorder %s34, 0
      %p149 = por %p147, %p148
      %p150 = scmp.ne.s32.totalorder %s138, %s139
      %p151 = scmp.eq.s32.totalorder %s35, 1
      %p152 = por %p150, %p151
      %p154 = scmp.ne.s32.totalorder %s139, %s153
      %p155 = scmp.eq.s32.totalorder %s35, 0
      %p156 = por %p154, %p155
      %s158 = sadd.s32 %s157, 1
      %p161 = scmp.eq.s32.totalorder %s29, 1
      %p162 = scmp.ne.s32.totalorder %s157, %s159
      %p163 = scmp.eq.s32.totalorder %s29, 0
      %p164 = por %p162, %p163
      %p165 = scmp.ne.s32.totalorder %s157, %s159
      %p166 = scmp.eq.s32.totalorder %s34, 1
      %p167 = por %p165, %p166
      %p168 = scmp.ne.s32.totalorder %s159, %s160
      %p169 = scmp.eq.s32.totalorder %s34, 0
      %p170 = por %p168, %p169
      %p171 = scmp.ne.s32.totalorder %s159, %s160
      %p172 = scmp.eq.s32.totalorder %s35, 1
      %p173 = por %p171, %p172
      %p175 = scmp.ne.s32.totalorder %s160, %s174
      %p176 = scmp.eq.s32.totalorder %s35, 0
      %p177 = por %p175, %p176
      %s179 = sadd.s32 %s178, 1
      %p182 = scmp.eq.s32.totalorder %s29, 1
      %p183 = scmp.ne.s32.totalorder %s178, %s180
      %p184 = scmp.eq.s32.totalorder %s29, 0
      %p185 = por %p183, %p184
      %p186 = scmp.ne.s32.totalorder %s178, %s180
      %p187 = scmp.eq.s32.totalorder %s34, 1
      %p188 = por %p186, %p187
      %p189 = scmp.ne.s32.totalorder %s180, %s181
      %p190 = scmp.eq.s32.totalorder %s34, 0
      %p191 = por %p189, %p190
      %p192 = scmp.ne.s32.totalorder %s180, %s181
      %p193 = scmp.eq.s32.totalorder %s35, 1
      %p194 = por %p192, %p193
      %p196 = scmp.ne.s32.totalorder %s181, %s195
      %p197 = scmp.eq.s32.totalorder %s35, 0
      %p198 = por %p196, %p197
      %s200 = sadd.s32 %s199, 1
      %p203 = scmp.eq.s32.totalorder %s29, 1
      %p204 = scmp.ne.s32.totalorder %s199, %s201
      %p205 = scmp.eq.s32.totalorder %s29, 0
      %p206 = por %p204, %p205
      %p207 = scmp.ne.s32.totalorder %s199, %s201
      %p208 = scmp.eq.s32.totalorder %s34, 1
      %p209 = por %p207, %p208
      %p210 = scmp.ne.s32.totalorder %s201, %s202
      %p211 = scmp.eq.s32.totalorder %s34, 0
      %p212 = por %p210, %p211
      %p213 = scmp.ne.s32.totalorder %s201, %s202
      %p214 = scmp.eq.s32.totalorder %s35, 1
      %p215 = por %p213, %p214
      %p217 = scmp.ne.s32.totalorder %s202, %s216
      %p218 = scmp.eq.s32.totalorder %s35, 0
      %p219 = por %p217, %p218
      %s221 = sadd.s32 %s220, 1
      %p224 = scmp.eq.s32.totalorder %s29, 1
      %p225 = scmp.ne.s32.totalorder %s220, %s222
      %p226 = scmp.eq.s32.totalorder %s29, 0
      %p227 = por %p225, %p226
      %p228 = scmp.ne.s32.totalorder %s220, %s222
      %p229 = scmp.eq.s32.totalorder %s34, 1
      %p230 = por %p228, %p229
      %p231 = scmp.ne.s32.totalorder %s222, %s223
      %p232 = scmp.eq.s32.totalorder %s34, 0
      %p233 = por %p231, %p232
      %p234 = scmp.ne.s32.totalorder %s222, %s223
      %p235 = scmp.eq.s32.totalorder %s35, 1
      %p236 = por %p234, %p235
      %p238 = scmp.ne.s32.totalorder %s223, %s237
      %p239 = scmp.eq.s32.totalorder %s35, 0
      %p240 = por %p238, %p239
      %s242 = sadd.s32 %s241, 1
      %p245 = scmp.eq.s32.totalorder %s29, 1
      %p246 = scmp.ne.s32.totalorder %s241, %s243
      %p247 = scmp.eq.s32.totalorder %s29, 0
      %p248 = por %p246, %p247
      %p249 = scmp.ne.s32.totalorder %s241, %s243
      %p250 = scmp.eq.s32.totalorder %s34, 1
      %p251 = por %p249, %p250
      %p252 = scmp.ne.s32.totalorder %s243, %s244
      %p253 = scmp.eq.s32.totalorder %s34, 0
      %p254 = por %p252, %p253
      %p255 = scmp.ne.s32.totalorder %s243, %s244
      %p256 = scmp.eq.s32.totalorder %s35, 1
      %p257 = por %p255, %p256
      %p259 = scmp.ne.s32.totalorder %s244, %s258
      %p260 = scmp.eq.s32.totalorder %s35, 0
      %p261 = por %p259, %p260
      %s263 = sadd.s32 %s262, 1
      %p266 = scmp.eq.s32.totalorder %s29, 1
      %p267 = scmp.ne.s32.totalorder %s262, %s264
      %p268 = scmp.eq.s32.totalorder %s29, 0
      %p269 = por %p267, %p268
      %p270 = scmp.ne.s32.totalorder %s262, %s264
      %p271 = scmp.eq.s32.totalorder %s34, 1
      %p272 = por %p270, %p271
      %p273 = scmp.ne.s32.totalorder %s264, %s265
      %p274 = scmp.eq.s32.totalorder %s34, 0
      %p275 = por %p273, %p274
      %p276 = scmp.ne.s32.totalorder %s264, %s265
      %p277 = scmp.eq.s32.totalorder %s35, 1
      %p278 = por %p276, %p277
      %p280 = scmp.ne.s32.totalorder %s265, %s279
      %p281 = scmp.eq.s32.totalorder %s35, 0
      %p282 = por %p280, %p281
      %s284 = sadd.s32 %s283, 1
      %p287 = scmp.eq.s32.totalorder %s29, 1
      %p288 = scmp.ne.s32.totalorder %s283, %s285
      %p289 = scmp.eq.s32.totalorder %s29, 0
      %p290 = por %p288, %p289
      %p291 = scmp.ne.s32.totalorder %s283, %s285
      %p292 = scmp.eq.s32.totalorder %s34, 1
      %p293 = por %p291, %p292
      %p294 = scmp.ne.s32.totalorder %s285, %s286
      %p295 = scmp.eq.s32.totalorder %s34, 0
      %p296 = por %p294, %p295
      %p297 = scmp.ne.s32.totalorder %s285, %s286
      %p298 = scmp.eq.s32.totalorder %s35, 1
      %p299 = por %p297, %p298
      %p301 = scmp.ne.s32.totalorder %s286, %s300
      %p302 = scmp.eq.s32.totalorder %s35, 0
      %p303 = por %p301, %p302
      %s305 = sadd.s32 %s304, 1
      %p308 = scmp.eq.s32.totalorder %s29, 1
      %p309 = scmp.ne.s32.totalorder %s304, %s306
      %p310 = scmp.eq.s32.totalorder %s29, 0
      %p311 = por %p309, %p310
      %p312 = scmp.ne.s32.totalorder %s304, %s306
      %p313 = scmp.eq.s32.totalorder %s34, 1
      %p314 = por %p312, %p313
      %p315 = scmp.ne.s32.totalorder %s306, %s307
      %p316 = scmp.eq.s32.totalorder %s34, 0
      %p317 = por %p315, %p316
      %p318 = scmp.ne.s32.totalorder %s306, %s307
      %p319 = scmp.eq.s32.totalorder %s35, 1
      %p320 = por %p318, %p319
      %p322 = scmp.ne.s32.totalorder %s307, %s321
      %p323 = scmp.eq.s32.totalorder %s35, 0
      %p324 = por %p322, %p323
      %s326 = sadd.s32 %s325, 1
      %p329 = scmp.eq.s32.totalorder %s29, 1
      %p330 = scmp.ne.s32.totalorder %s325, %s327
      %p331 = scmp.eq.s32.totalorder %s29, 0
      %p332 = por %p330, %p331
      %p333 = scmp.ne.s32.totalorder %s325, %s327
      %p334 = scmp.eq.s32.totalorder %s34, 1
      %p335 = por %p333, %p334
      %p336 = scmp.ne.s32.totalorder %s327, %s328
      %p337 = scmp.eq.s32.totalorder %s34, 0
      %p338 = por %p336, %p337
      %p339 = scmp.ne.s32.totalorder %s327, %s328
      %p340 = scmp.eq.s32.totalorder %s35, 1
      %p341 = por %p339, %p340
      %p343 = scmp.ne.s32.totalorder %s328, %s342
      %p344 = scmp.eq.s32.totalorder %s35, 0
      %p345 = por %p343, %p344
      %s347 = sadd.s32 %s346, 1
      %p350 = scmp.eq.s32.totalorder %s29, 1
      %p351 = scmp.ne.s32.totalorder %s346, %s348
      %p352 = scmp.eq.s32.totalorder %s29, 0
      %p353 = por %p351, %p352
      %p354 = scmp.ne.s32.totalorder %s346, %s348
      %p355 = scmp.eq.s32.totalorder %s34, 1
      %p356 = por %p354, %p355
      %p357 = scmp.ne.s32.totalorder %s348, %s349
      %p358 = scmp.eq.s32.totalorder %s34, 0
      %p359 = por %p357, %p358
      %p360 = scmp.ne.s32.totalorder %s348, %s349
      %p361 = scmp.eq.s32.totalorder %s35, 1
      %p362 = por %p360, %p361
      %p364 = scmp.ne.s32.totalorder %s349, %s363
      %p365 = scmp.eq.s32.totalorder %s35, 0
      %p366 = por %p364, %p365
      %s368 = sadd.s32 %s367, 1
      %p371 = scmp.eq.s32.totalorder %s29, 1
      %p372 = scmp.ne.s32.totalorder %s367, %s369
      %p373 = scmp.eq.s32.totalorder %s29, 0
      %p374 = por %p372, %p373
      %p375 = scmp.ne.s32.totalorder %s367, %s369
      %p376 = scmp.eq.s32.totalorder %s34, 1
      %p377 = por %p375, %p376
      %p378 = scmp.ne.s32.totalorder %s369, %s370
      %p379 = scmp.eq.s32.totalorder %s34, 0
      %p380 = por %p378, %p379
      %p381 = scmp.ne.s32.totalorder %s369, %s370
      %p382 = scmp.eq.s32.totalorder %s35, 1
      %p383 = por %p381, %p382
      %p385 = scmp.ne.s32.totalorder %s370, %s384
      %p386 = scmp.eq.s32.totalorder %s35, 0
      %p387 = por %p385, %p386
      %s389 = sadd.s32 %s388, 1
      %p392 = scmp.eq.s32.totalorder %s29, 1
      %p393 = scmp.ne.s32.totalorder %s388, %s390
      %p394 = scmp.eq.s32.totalorder %s29, 0
      %p395 = por %p393, %p394
      %p396 = scmp.ne.s32.totalorder %s388, %s390
      %p397 = scmp.eq.s32.totalorder %s34, 1
      %p398 = por %p396, %p397
      %p399 = scmp.ne.s32.totalorder %s390, %s391
      %p400 = scmp.eq.s32.totalorder %s34, 0
      %p401 = por %p399, %p400
      %p402 = scmp.ne.s32.totalorder %s390, %s391
      %p403 = scmp.eq.s32.totalorder %s35, 1
      %p404 = por %p402, %p403
      %p406 = scmp.ne.s32.totalorder %s391, %s405
      %p407 = scmp.eq.s32.totalorder %s35, 0
      %p408 = por %p406, %p407
      %s410 = sadd.s32 %s409, 1
      %p413 = scmp.eq.s32.totalorder %s29, 1
      %p414 = scmp.ne.s32.totalorder %s409, %s411
      %p415 = scmp.eq.s32.totalorder %s29, 0
      %p416 = por %p414, %p415
      %p417 = scmp.ne.s32.totalorder %s409, %s411
      %p418 = scmp.eq.s32.totalorder %s34, 1
      %p419 = por %p417, %p418
      %p420 = scmp.ne.s32.totalorder %s411, %s412
      %p421 = scmp.eq.s32.totalorder %s34, 0
      %p422 = por %p420, %p421
      %p423 = scmp.ne.s32.totalorder %s411, %s412
      %p424 = scmp.eq.s32.totalorder %s35, 1
      %p425 = por %p423, %p424
      %p427 = scmp.ne.s32.totalorder %s412, %s426
      %p428 = scmp.eq.s32.totalorder %s35, 0
      %p429 = por %p427, %p428
      %s430 = ssub.s32 %s29, %s36
      %p431 = scmp.eq.s32.totalorder %s430, 0
      %s433 = sadd.s32 %s432, 1
      %s434 = scalar_select %p431, %s432, %s433
      %p437 = pneg %p431
      %p438 = scmp.eq.s32.totalorder %s29, 1
      %p439 = por %p437, %p438
      %p440 = scmp.ne.s32.totalorder %s432, %s435
      %p441 = scmp.eq.s32.totalorder %s29, 0
      %p442 = por %p440, %p441
      %p443 = scmp.ne.s32.totalorder %s432, %s435
      %p444 = scmp.eq.s32.totalorder %s34, 1
      %p445 = por %p443, %p444
      %p446 = scmp.ne.s32.totalorder %s435, %s436
      %p447 = scmp.eq.s32.totalorder %s34, 0
      %p448 = por %p446, %p447
      %p449 = scmp.ne.s32.totalorder %s435, %s436
      %p450 = scmp.eq.s32.totalorder %s35, 1
      %p451 = por %p449, %p450
      %p453 = scmp.ne.s32.totalorder %s436, %s452
      %p454 = scmp.eq.s32.totalorder %s35, 0
      %p455 = por %p453, %p454
      %p456 = scmp.le.s32.totalorder 1, %s29
      %p457 = scmp.lt.s32.totalorder %s29, 3
      %p458 = pnand %p456, %p457
      %p459 = pneg %p458
      // Predicated region
      $region9: #{tpu_custom_call.1} parent=5 // pred_check
        _
      $region10: #{tpu_custom_call.1} parent=5 // pred_check_branch
        %461 = sbr.rel (%p458) target = $region12
      $region11: #{tpu_custom_call.1} parent=5 // pred_region
        %s462 = ssub.s32 %s29, 1
        // Predicated region
        $region13: #{tpu_custom_call.1} parent=11 // pred_check
          %p463 = pneg %p128
        $region14: #{tpu_custom_call.1} parent=11 // pred_check_branch
          %465 = sbr.rel (%p463) target = $region16
        $region15: #{tpu_custom_call.1} parent=11 // pred_region
          _
        $region16: #{tpu_custom_call.1} parent=11 // pred_fallthru
          _
        // Predicated region
        $region17: #{tpu_custom_call.1} parent=11 // pred_check
          %p466 = pneg %p149
        $region18: #{tpu_custom_call.1} parent=11 // pred_check_branch
          %468 = sbr.rel (%p466) target = $region20
        $region19: #{tpu_custom_call.1} parent=11 // pred_region
          _
        $region20: #{tpu_custom_call.1} parent=11 // pred_fallthru
          _
        // Predicated region
        $region21: #{tpu_custom_call.1} parent=11 // pred_check
          %p469 = pneg %p170
        $region22: #{tpu_custom_call.1} parent=11 // pred_check_branch
          %471 = sbr.rel (%p469) target = $region24
        $region23: #{tpu_custom_call.1} parent=11 // pred_region
          _
        $region24: #{tpu_custom_call.1} parent=11 // pred_fallthru
          _
        // Predicated region
        $region25: #{tpu_custom_call.1} parent=11 // pred_check
          %p472 = pneg %p191
        $region26: #{tpu_custom_call.1} parent=11 // pred_check_branch
          %474 = sbr.rel (%p472) target = $region28
        $region27: #{tpu_custom_call.1} parent=11 // pred_region
          _
        $region28: #{tpu_custom_call.1} parent=11 // pred_fallthru
          _
        // Predicated region
        $region29: #{tpu_custom_call.1} parent=11 // pred_check
          %p475 = pneg %p212
        $region30: #{tpu_custom_call.1} parent=11 // pred_check_branch
          %477 = sbr.rel (%p475) target = $region32
        $region31: #{tpu_custom_call.1} parent=11 // pred_region
          _
        $region32: #{tpu_custom_call.1} parent=11 // pred_fallthru
          _
        // Predicated region
        $region33: #{tpu_custom_call.1} parent=11 // pred_check
          %p478 = pneg %p233
        $region34: #{tpu_custom_call.1} parent=11 // pred_check_branch
          %480 = sbr.rel (%p478) target = $region36
        $region35: #{tpu_custom_call.1} parent=11 // pred_region
          _
        $region36: #{tpu_custom_call.1} parent=11 // pred_fallthru
          _
        // Predicated region
        $region37: #{tpu_custom_call.1} parent=11 // pred_check
          %p481 = pneg %p254
        $region38: #{tpu_custom_call.1} parent=11 // pred_check_branch
          %483 = sbr.rel (%p481) target = $region40
        $region39: #{tpu_custom_call.1} parent=11 // pred_region
          _
        $region40: #{tpu_custom_call.1} parent=11 // pred_fallthru
          _
        // Predicated region
        $region41: #{tpu_custom_call.1} parent=11 // pred_check
          %p484 = pneg %p275
        $region42: #{tpu_custom_call.1} parent=11 // pred_check_branch
          %486 = sbr.rel (%p484) target = $region44
        $region43: #{tpu_custom_call.1} parent=11 // pred_region
          _
        $region44: #{tpu_custom_call.1} parent=11 // pred_fallthru
          _
        // Predicated region
        $region45: #{tpu_custom_call.1} parent=11 // pred_check
          %p487 = pneg %p296
        $region46: #{tpu_custom_call.1} parent=11 // pred_check_branch
          %489 = sbr.rel (%p487) target = $region48
        $region47: #{tpu_custom_call.1} parent=11 // pred_region
          _
        $region48: #{tpu_custom_call.1} parent=11 // pred_fallthru
          _
        // Predicated region
        $region49: #{tpu_custom_call.1} parent=11 // pred_check
          %p490 = pneg %p317
        $region50: #{tpu_custom_call.1} parent=11 // pred_check_branch
          %492 = sbr.rel (%p490) target = $region52
        $region51: #{tpu_custom_call.1} parent=11 // pred_region
          _
        $region52: #{tpu_custom_call.1} parent=11 // pred_fallthru
          _
        // Predicated region
        $region53: #{tpu_custom_call.1} parent=11 // pred_check
          %p493 = pneg %p338
        $region54: #{tpu_custom_call.1} parent=11 // pred_check_branch
          %495 = sbr.rel (%p493) target = $region56
        $region55: #{tpu_custom_call.1} parent=11 // pred_region
          _
        $region56: #{tpu_custom_call.1} parent=11 // pred_fallthru
          _
        // Predicated region
        $region57: #{tpu_custom_call.1} parent=11 // pred_check
          %p496 = pneg %p359
        $region58: #{tpu_custom_call.1} parent=11 // pred_check_branch
          %498 = sbr.rel (%p496) target = $region60
        $region59: #{tpu_custom_call.1} parent=11 // pred_region
          _
        $region60: #{tpu_custom_call.1} parent=11 // pred_fallthru
          _
        // Predicated region
        $region61: #{tpu_custom_call.1} parent=11 // pred_check
          %p499 = pneg %p380
        $region62: #{tpu_custom_call.1} parent=11 // pred_check_branch
          %501 = sbr.rel (%p499) target = $region64
        $region63: #{tpu_custom_call.1} parent=11 // pred_region
          _
        $region64: #{tpu_custom_call.1} parent=11 // pred_fallthru
          _
        // Predicated region
        $region65: #{tpu_custom_call.1} parent=11 // pred_check
          %p502 = pneg %p401
        $region66: #{tpu_custom_call.1} parent=11 // pred_check_branch
          %504 = sbr.rel (%p502) target = $region68
        $region67: #{tpu_custom_call.1} parent=11 // pred_region
          _
        $region68: #{tpu_custom_call.1} parent=11 // pred_fallthru
          _
        // Predicated region
        $region69: #{tpu_custom_call.1} parent=11 // pred_check
          %p505 = pneg %p422
        $region70: #{tpu_custom_call.1} parent=11 // pred_check_branch
          %507 = sbr.rel (%p505) target = $region72
        $region71: #{tpu_custom_call.1} parent=11 // pred_region
          _
        $region72: #{tpu_custom_call.1} parent=11 // pred_fallthru
          _
      $region12: #{tpu_custom_call.1} parent=5 // pred_fallthru
        _
      %p508 = scmp.lt.s32.totalorder %s29, 2
      // Predicated region
      $region73: #{tpu_custom_call.1} parent=5 // pred_check
        %p509 = pneg %p508
      $region74: #{tpu_custom_call.1} parent=5 // pred_check_branch
        %511 = sbr.rel (%p509) target = $region76
      $region75: #{tpu_custom_call.1} parent=5 // pred_region
        // Predicated region
        $region77: #{tpu_custom_call.1} parent=75 // pred_check
          %p512 = pneg %p49
        $region78: #{tpu_custom_call.1} parent=75 // pred_check_branch
          %514 = sbr.rel (%p512) target = $region80
        $region79: #{tpu_custom_call.1} parent=75 // pred_region
          %p515 = scmp.lt.s32.totalorder %s29, 1
          %s516 = scalar_select %p515, %s29, 1
          %s517 = smul.addr %s516, 2
          %s518 = smul.addr %s517, 8
          %s519 = scalar_lea.vmem %s0, %s518
        $region80: #{tpu_custom_call.1} parent=75 // pred_fallthru
          _
        // Predicated region
        $region81: #{tpu_custom_call.1} parent=75 // pred_check
          %p520 = pneg %p75
        $region82: #{tpu_custom_call.1} parent=75 // pred_check_branch
          %522 = sbr.rel (%p520) target = $region84
        $region83: #{tpu_custom_call.1} parent=75 // pred_region
          %p523 = scmp.lt.s32.totalorder %s29, 1
          %s524 = scalar_select %p523, %s29, 1
          %s525 = smul.addr %s524, 2
          %s526 = smul.addr %s525, 8
          %s527 = scalar_lea.vmem %s1, %s526
        $region84: #{tpu_custom_call.1} parent=75 // pred_fallthru
          _
        // Predicated region
        $region85: #{tpu_custom_call.1} parent=75 // pred_check
          %p528 = pneg %p101
        $region86: #{tpu_custom_call.1} parent=75 // pred_check_branch
          %530 = sbr.rel (%p528) target = $region88
        $region87: #{tpu_custom_call.1} parent=75 // pred_region
          %p531 = scmp.lt.s32.totalorder %s29, 1
          %s532 = scalar_select %p531, %s29, 1
          %s533 = smul.addr %s532, 2
          %s534 = smul.addr %s533, 8
          %s535 = scalar_lea.vmem %s2, %s534
        $region88: #{tpu_custom_call.1} parent=75 // pred_fallthru
          _
      $region76: #{tpu_custom_call.1} parent=5 // pred_fallthru
        _
      %p536 = scmp.le.s32.totalorder 1, %s29
      %p537 = scmp.lt.s32.totalorder %s29, 3
      %p538 = pnand %p536, %p537
      %p539 = pneg %p538
      // Predicated region
      $region89: #{tpu_custom_call.1} parent=5 // pred_check
        _
      $region90: #{tpu_custom_call.1} parent=5 // pred_check_branch
        %541 = sbr.rel (%p538) target = $region92
      $region91: #{tpu_custom_call.1} parent=5 // pred_region
        %s542 = ssub.s32 %s29, 1
        %p543 = scmp.lt.s32.totalorder %s34, 1
        %s544 = scalar_select %p543, %s34, 1
        %s545 = smul.addr %s544, 2
        %s546 = smul.addr %s545, 8
        %s547 = scalar_lea.vmem %s0, %s546
        %p548 = pneg %p55
        %p549 = pneg %p52
        %p550 = scmp.lt.s32.totalorder %s34, 1
        %s551 = scalar_select %p550, %s34, 1
        %s552 = smul.addr %s551, 2
        %s553 = smul.addr %s552, 8
        %s554 = scalar_lea.vmem %s1, %s553
        %p555 = pneg %p81
        %p556 = pneg %p78
        %p557 = scmp.lt.s32.totalorder %s34, 1
        %s558 = scalar_select %p557, %s34, 1
        %s559 = smul.addr %s558, 2
        %s560 = smul.addr %s559, 8
        %s561 = scalar_lea.vmem %s2, %s560
        %p562 = pneg %p107
        %p563 = pneg %p104
        %p564 = pneg %p128
        %p565 = pneg %p125
        %p566 = pneg %p149
        %p567 = pneg %p146
        %p568 = pneg %p170
        %p569 = pneg %p167
        %p570 = pneg %p191
        %p571 = pneg %p188
        %p572 = pneg %p212
        %p573 = pneg %p209
        %p574 = pneg %p233
        %p575 = pneg %p230
        %p576 = pneg %p254
        %p577 = pneg %p251
        %p578 = pneg %p275
        %p579 = pneg %p272
        %p580 = pneg %p296
        %p581 = pneg %p293
        %p582 = pneg %p317
        %p583 = pneg %p314
        %p584 = pneg %p338
        %p585 = pneg %p335
        %p586 = pneg %p359
        %p587 = pneg %p356
        %p588 = pneg %p380
        %p589 = pneg %p377
        %p590 = pneg %p401
        %p591 = pneg %p398
        %p592 = pneg %p422
        %p593 = pneg %p419
        %p594 = pneg %p448
        %p595 = pneg %p445
        %s596 = sand.u32 %s435, 1
        %s597 = scalar_lea.sflag [#allocation4], %s596
        %s598 = sand.u32 %s435, 1
        %s599 = smul.addr %s598, 16
        %s600 = scalar_lea.vmem [#allocation3], %s599
        %p601 = scmp.lt.s32.totalorder %s34, 1
        %s602 = scalar_select %p601, %s34, 1
        %s603 = smul.addr %s602, 2
        %s604 = smul.addr %s603, 8
        %s605 = scalar_lea.vmem %s0, %s604
        %p606 = scmp.lt.s32.totalorder %s34, 1
        %s607 = scalar_select %p606, %s34, 1
        %s608 = smul.addr %s607, 2
        %s609 = smul.addr %s608, 8
        %s610 = scalar_lea.vmem %s1, %s609
        %p611 = scmp.lt.s32.totalorder %s34, 1
        %s612 = scalar_select %p611, %s34, 1
        %s613 = smul.addr %s612, 2
        %s614 = smul.addr %s613, 8
        %s615 = scalar_lea.vmem %s2, %s614
        %v616 = vld [vmem:[%s610] sm:$0xff]
        %v617 = vld [vmem:[%s610 + $0x8] sm:$0xff]
        %v618 = vld [vmem:[%s615] sm:$0xff]
        %v619 = vld [vmem:[%s615 + $0x8] sm:$0xff]
        %v620 = vld [vmem:[%s605] sm:$0xff]
        %v621 = vld [vmem:[%s605 + $0x8] sm:$0xff]
        %v622 = vld [vmem:[%s3] sm:$0xff]
        %vm623 = vcmask 64512
        %v625 = vsel %vm623, %v620, 0
        %v628 = vsel %vm623, %v621, 0
        %630 = vmatprep.subr.mxu0 0.0
        %631 = vmatpush1.msra.mxu0 %v622
        %632 = vmatprep.subr.mxu0 0.0
        %633 = vmatpush1.msra.mxu0 0.0
        %634 = vmatprep.subr.mxu0 0.0
        %635 = vmatpush1.msra.mxu0 0.0
        %636 = vmatprep.subr.mxu0 0.0
        %637 = vmatpush1.msra.mxu0 0.0
        %638 = vmatprep.subr.mxu0 0.0
        %639 = vmatpush1.msra.mxu0 0.0
        %640 = vmatprep.subr.mxu0 0.0
        %641 = vmatpush1.msra.mxu0 0.0
        %642 = vmatprep.subr.mxu0 0.0
        %643 = vmatpush1.msra.mxu0 0.0
        %644 = vmatprep.subr.mxu0 0.0
        %645 = vmatpush1.msra.mxu0 0.0
        %646 = vmatprep.subr.mxu0 0.0
        %647 = vmatpush1.msra.mxu0 0.0
        %648 = vmatprep.subr.mxu0 0.0
        %649 = vmatpush1.msra.mxu0 0.0
        %650 = vmatprep.subr.mxu0 0.0
        %651 = vmatpush1.msra.mxu0 0.0
        %652 = vmatprep.subr.mxu0 0.0
        %653 = vmatpush1.msra.mxu0 0.0
        %654 = vmatprep.subr.mxu0 0.0
        %655 = vmatpush1.msra.mxu0 0.0
        %656 = vmatprep.subr.mxu0 0.0
        %657 = vmatpush1.msra.mxu0 0.0
        %658 = vmatprep.subr.mxu0 0.0
        %659 = vmatpush1.msra.mxu0 0.0
        %660 = vmatprep.subr.mxu0 0.0
        %661 = vmatpush1.msra.mxu0 0.0
        %662 = vmatprep.subr.mxu0 0.0
        %663 = vmatpush1.msra.mxu0 0.0
        %664 = vmatprep.subr.mxu0 0.0
        %665 = vmatpush1.msra.mxu0 0.0
        %666 = vmatprep.subr.mxu0 0.0
        %667 = vmatpush1.msra.mxu0 0.0
        %668 = vmatprep.subr.mxu0 0.0
        %669 = vmatpush1.msra.mxu0 0.0
        %670 = vmatprep.subr.mxu0 0.0
        %671 = vmatpush1.msra.mxu0 0.0
        %672 = vmatprep.subr.mxu0 0.0
        %673 = vmatpush1.msra.mxu0 0.0
        %674 = vmatprep.subr.mxu0 0.0
        %675 = vmatpush1.msra.mxu0 0.0
        %676 = vmatprep.subr.mxu0 0.0
        %677 = vmatpush1.msra.mxu0 0.0
        %678 = vmatprep.subr.mxu0 0.0
        %679 = vmatpush1.msra.mxu0 0.0
        %680 = vmatprep.subr.mxu0 0.0
        %681 = vmatpush1.msra.mxu0 0.0
        %682 = vmatprep.subr.mxu0 0.0
        %683 = vmatpush1.msra.mxu0 0.0
        %684 = vmatprep.subr.mxu0 0.0
        %685 = vmatpush1.msra.mxu0 0.0
        %686 = vmatprep.subr.mxu0 0.0
        %687 = vmatpush1.msra.mxu0 0.0
        %688 = vmatprep.subr.mxu0 0.0
        %689 = vmatpush1.msra.mxu0 0.0
        %690 = vmatprep.subr.mxu0 0.0
        %691 = vmatpush1.msra.mxu0 0.0
        %692 = vmatprep.subr.mxu0 0.0
        %693 = vmatpush1.msra.mxu0 0.0
        %694 = vmatprep.mubr.f32.mxu0 0.0
        %695 = vmatmul.mubr.f32.gmra.mrb[0].mxu0 %v625
        %v696 = vpop.f32.mrb[0].mxu0
        %v697 = vadd.f32 0.0, %v696
        %v698 = vpop.f32.mrb[0].mxu0
        %699 = vmatprep.mubr.f32.mxu0 0.0
        %700 = vmatmul.mubr.f32.gmra.mrb[0].mxu0 %v628
        %v701 = vpop.f32.mrb[0].mxu0
        %v702 = vadd.f32 0.0, %v701
        %v703 = vpop.f32.mrb[0].mxu0
        %704 = vdwg.mxu0
        %v705 = vld [vmem:[%s5] sm:$0xff]
        %v706 = vld [vmem:[%s5 + $0x8] sm:$0xff]
        %vm707 = vcmask 130048
        %v709 = vsel %vm707, %v697, 0
        %v712 = vsel %vm707, %v702, 0
        %714 = vmatprep.subr.mxu0 0.0
        %715 = vmatpush1.msra.mxu0 %v705
        %716 = vmatprep.subr.mxu0 0.0
        %717 = vmatpush1.msra.mxu0 %v706
        %718 = vmatprep.subr.mxu0 0.0
        %719 = vmatpush1.msra.mxu0 0.0
        %720 = vmatprep.subr.mxu0 0.0
        %721 = vmatpush1.msra.mxu0 0.0
        %722 = vmatprep.subr.mxu0 0.0
        %723 = vmatpush1.msra.mxu0 0.0
        %724 = vmatprep.subr.mxu0 0.0
        %725 = vmatpush1.msra.mxu0 0.0
        %726 = vmatprep.subr.mxu0 0.0
        %727 = vmatpush1.msra.mxu0 0.0
        %728 = vmatprep.subr.mxu0 0.0
        %729 = vmatpush1.msra.mxu0 0.0
        %730 = vmatprep.subr.mxu0 0.0
        %731 = vmatpush1.msra.mxu0 0.0
        %732 = vmatprep.subr.mxu0 0.0
        %733 = vmatpush1.msra.mxu0 0.0
        %734 = vmatprep.subr.mxu0 0.0
        %735 = vmatpush1.msra.mxu0 0.0
        %736 = vmatprep.subr.mxu0 0.0
        %737 = vmatpush1.msra.mxu0 0.0
        %738 = vmatprep.subr.mxu0 0.0
        %739 = vmatpush1.msra.mxu0 0.0
        %740 = vmatprep.subr.mxu0 0.0
        %741 = vmatpush1.msra.mxu0 0.0
        %742 = vmatprep.subr.mxu0 0.0
        %743 = vmatpush1.msra.mxu0 0.0
        %744 = vmatprep.subr.mxu0 0.0
        %745 = vmatpush1.msra.mxu0 0.0
        %746 = vmatprep.subr.mxu0 0.0
        %747 = vmatpush1.msra.mxu0 0.0
        %748 = vmatprep.subr.mxu0 0.0
        %749 = vmatpush1.msra.mxu0 0.0
        %750 = vmatprep.subr.mxu0 0.0
        %751 = vmatpush1.msra.mxu0 0.0
        %752 = vmatprep.subr.mxu0 0.0
        %753 = vmatpush1.msra.mxu0 0.0
        %754 = vmatprep.subr.mxu0 0.0
        %755 = vmatpush1.msra.mxu0 0.0
        %756 = vmatprep.subr.mxu0 0.0
        %757 = vmatpush1.msra.mxu0 0.0
        %758 = vmatprep.subr.mxu0 0.0
        %759 = vmatpush1.msra.mxu0 0.0
        %760 = vmatprep.subr.mxu0 0.0
        %761 = vmatpush1.msra.mxu0 0.0
        %762 = vmatprep.subr.mxu0 0.0
        %763 = vmatpush1.msra.mxu0 0.0
        %764 = vmatprep.subr.mxu0 0.0
        %765 = vmatpush1.msra.mxu0 0.0
        %766 = vmatprep.subr.mxu0 0.0
        %767 = vmatpush1.msra.mxu0 0.0
        %768 = vmatprep.subr.mxu0 0.0
        %769 = vmatpush1.msra.mxu0 0.0
        %770 = vmatprep.subr.mxu0 0.0
        %771 = vmatpush1.msra.mxu0 0.0
        %772 = vmatprep.subr.mxu0 0.0
        %773 = vmatpush1.msra.mxu0 0.0
        %774 = vmatprep.subr.mxu0 0.0
        %775 = vmatpush1.msra.mxu0 0.0
        %776 = vmatprep.subr.mxu0 0.0
        %777 = vmatpush1.msra.mxu0 0.0
        %778 = vmatprep.mubr.f32.mxu0 0.0
        %779 = vmatmul.mubr.f32.gmra.mrb[0].mxu0 %v709
        %v780 = vpop.f32.mrb[0].mxu0
        %v781 = vadd.f32 0.0, %v780
        %v782 = vpop.f32.mrb[0].mxu0
        %783 = vmatprep.mubr.f32.mxu0 0.0
        %784 = vmatmul.mubr.f32.gmra.mrb[0].mxu0 %v712
        %v785 = vpop.f32.mrb[0].mxu0
        %v786 = vadd.f32 0.0, %v785
        %v787 = vpop.f32.mrb[0].mxu0
        %788 = vdwg.mxu0
        %v789 = vld [vmem:[%s4] sm:$0xff]
        %v790 = vld [vmem:[%s4 + $0x8] sm:$0xff]
        %791 = vxpose.xlu0.b32.start [1/16] %v789, 128
        %792 = vxpose.xlu0.b32.cont [2/16] %v790, 128
        %793 = vxpose.xlu0.b32.cont [3/16] 0.0, 128
        %794 = vxpose.xlu0.b32.cont [4/16] 0.0, 128
        %795 = vxpose.xlu0.b32.cont [5/16] 0.0, 128
        %796 = vxpose.xlu0.b32.cont [6/16] 0.0, 128
        %797 = vxpose.xlu0.b32.cont [7/16] 0.0, 128
        %798 = vxpose.xlu0.b32.cont [8/16] 0.0, 128
        %799 = vxpose.xlu0.b32.cont [9/16] 0.0, 128
        %800 = vxpose.xlu0.b32.cont [10/16] 0.0, 128
        %801 = vxpose.xlu0.b32.cont [11/16] 0.0, 128
        %802 = vxpose.xlu0.b32.cont [12/16] 0.0, 128
        %803 = vxpose.xlu0.b32.cont [13/16] 0.0, 128
        %804 = vxpose.xlu0.b32.cont [14/16] 0.0, 128
        %805 = vxpose.xlu0.b32.cont [15/16] 0.0, 128
        %806 = vxpose.xlu0.b32.end [16/16] 0.0, 128
        %v807 = vpop.trf.xlu0
        %v808 = vpop.trf.xlu0
        %v809 = vpop.trf.xlu0
        %v810 = vpop.trf.xlu0
        %v811 = vpop.trf.xlu0
        %v812 = vpop.trf.xlu0
        %v813 = vpop.trf.xlu0
        %v814 = vpop.trf.xlu0
        %v815 = vpop.trf.xlu0
        %v816 = vpop.trf.xlu0
        %v817 = vpop.trf.xlu0
        %v818 = vpop.trf.xlu0
        %v819 = vpop.trf.xlu0
        %v820 = vpop.trf.xlu0
        %v821 = vpop.trf.xlu0
        %v822 = vpop.trf.xlu0
        %v824 = vsel %vm707, %v807, 0
        %826 = vmatprep.subr.mxu0 0.0
        %827 = vmatpush1.xpose.msra.mxu0 %v709
        %828 = vmatprep.subr.mxu0 0.0
        %829 = vmatpush1.xpose.msra.mxu0 %v712
        %830 = vmatprep.subr.mxu0 0.0
        %831 = vmatpush1.xpose.msra.mxu0 0.0
        %832 = vmatprep.subr.mxu0 0.0
        %833 = vmatpush1.xpose.msra.mxu0 0.0
        %834 = vmatprep.subr.mxu0 0.0
        %835 = vmatpush1.xpose.msra.mxu0 0.0
        %836 = vmatprep.subr.mxu0 0.0
        %837 = vmatpush1.xpose.msra.mxu0 0.0
        %838 = vmatprep.subr.mxu0 0.0
        %839 = vmatpush1.xpose.msra.mxu0 0.0
        %840 = vmatprep.subr.mxu0 0.0
        %841 = vmatpush1.xpose.msra.mxu0 0.0
        %842 = vmatprep.subr.mxu0 0.0
        %843 = vmatpush1.xpose.msra.mxu0 0.0
        %844 = vmatprep.subr.mxu0 0.0
        %845 = vmatpush1.xpose.msra.mxu0 0.0
        %846 = vmatprep.subr.mxu0 0.0
        %847 = vmatpush1.xpose.msra.mxu0 0.0
        %848 = vmatprep.subr.mxu0 0.0
        %849 = vmatpush1.xpose.msra.mxu0 0.0
        %850 = vmatprep.subr.mxu0 0.0
        %851 = vmatpush1.xpose.msra.mxu0 0.0
        %852 = vmatprep.subr.mxu0 0.0
        %853 = vmatpush1.xpose.msra.mxu0 0.0
        %854 = vmatprep.subr.mxu0 0.0
        %855 = vmatpush1.xpose.msra.mxu0 0.0
        %856 = vmatprep.subr.mxu0 0.0
        %857 = vmatpush1.xpose.msra.mxu0 0.0
        %858 = vmatprep.subr.mxu0 0.0
        %859 = vmatpush1.xpose.msra.mxu0 0.0
        %860 = vmatprep.subr.mxu0 0.0
        %861 = vmatpush1.xpose.msra.mxu0 0.0
        %862 = vmatprep.subr.mxu0 0.0
        %863 = vmatpush1.xpose.msra.mxu0 0.0
        %864 = vmatprep.subr.mxu0 0.0
        %865 = vmatpush1.xpose.msra.mxu0 0.0
        %866 = vmatprep.subr.mxu0 0.0
        %867 = vmatpush1.xpose.msra.mxu0 0.0
        %868 = vmatprep.subr.mxu0 0.0
        %869 = vmatpush1.xpose.msra.mxu0 0.0
        %870 = vmatprep.subr.mxu0 0.0
        %871 = vmatpush1.xpose.msra.mxu0 0.0
        %872 = vmatprep.subr.mxu0 0.0
        %873 = vmatpush1.xpose.msra.mxu0 0.0
        %874 = vmatprep.subr.mxu0 0.0
        %875 = vmatpush1.xpose.msra.mxu0 0.0
        %876 = vmatprep.subr.mxu0 0.0
        %877 = vmatpush1.xpose.msra.mxu0 0.0
        %878 = vmatprep.subr.mxu0 0.0
        %879 = vmatpush1.xpose.msra.mxu0 0.0
        %880 = vmatprep.subr.mxu0 0.0
        %881 = vmatpush1.xpose.msra.mxu0 0.0
        %882 = vmatprep.subr.mxu0 0.0
        %883 = vmatpush1.xpose.msra.mxu0 0.0
        %884 = vmatprep.subr.mxu0 0.0
        %885 = vmatpush1.xpose.msra.mxu0 0.0
        %886 = vmatprep.subr.mxu0 0.0
        %887 = vmatpush1.xpose.msra.mxu0 0.0
        %888 = vmatprep.subr.mxu0 0.0
        %889 = vmatpush1.xpose.msra.mxu0 0.0
        %890 = vmatprep.mubr.f32.mxu0 0.0
        %891 = vmatmul.mubr.f32.gmra.mrb[0].mxu0 %v824
        %v892 = vpop.f32.mrb[0].mxu0
        %v893 = vadd.f32 0.0, %v892
        %v894 = vpop.f32.mrb[0].mxu0
        %895 = vdwg.mxu0
        %v896 = vld [vmem:[%s6] sm:$0x1]
        %v897 = vld [vmem:[%s7] sm:$0x1]
        %899 = vset.pattern.permute.xlu0 0
        %900 = vperm.xlu0 %899, %v781
        %v901 = vpop.permute.xlu0 %900
        %904 = vset.pattern.permute.xlu0 0
        %905 = vperm.xlu0 %904, %v786
        %v906 = vpop.permute.xlu0 %905
        %v908 = vlaneseq
        %v909 = vshrl.u32 %v908, 7
        %v910 = vsub.s32 0, %v909
        %v911 = vrot.slane %v893, %v910
        %v912 = vadd.f32 %v901, %v911
        %v913 = vadd.f32 %v906, %v911
        %v915 = vlaneseq
        %v916 = vshrl.u32 %v915, 7
        %v917 = vsub.s32 0, %v916
        %v918 = vrot.slane %v896, %v917
        %919 = vset.pattern.permute.xlu0 0
        %920 = vperm.xlu0 %919, %v918
        %v921 = vpop.permute.xlu0 %920
        %v923 = vmul.f32 %v618, %v921
        %v924 = vmul.f32 %v619, %v921
        %v925 = vadd.f32 %v912, %v923
        %v926 = vadd.f32 %v913, %v924
        %v927 = vmul.f32 %v925, 0.2
        %v928 = vmul.f32 %v926, 0.2
        %v929 = vmax.f32 %v925, %v927
        %v930 = vmax.f32 %v926, %v928
        %v931 = vadd.f32 %v929, %v616
        %v932 = vadd.f32 %v930, %v617
        %v933 = vsel %vm707, %v931, -inf
        %934 = vmax.xlane.f32.xlu0 %v933
        %v935 = vpop.xlane.xlu0 %934
        %v936 = vsel %vm707, %v932, -inf
        %937 = vmax.xlane.f32.xlu0 %v936
        %v938 = vpop.xlane.xlu0 %937
        %v939 = vsub.f32 %v931, %v935
        %v940 = vsub.f32 %v932, %v938
        %v941 = vmul.f32 %v939, 1.442695
        %v942 = vpow.pop %v941
        %v943 = vmul.f32 %v940, 1.442695
        %v944 = vpow.pop %v943
        %v945 = vsel %vm707, %v942, 0.0
        %946 = vadd.xlane.f32.xlu0 %v945
        %v947 = vpop.xlane.xlu0 %946
        %v948 = vsel %vm707, %v944, 0.0
        %949 = vadd.xlane.f32.xlu0 %v948
        %v950 = vpop.xlane.xlu0 %949
        %v952 = vsel %vm707, %v942, 0
        %v955 = vsel %vm707, %v944, 0
        %957 = vmatprep.subr.mxu0 0.0
        %958 = vmatpush1.msra.mxu0 %v697
        %959 = vmatprep.subr.mxu0 0.0
        %960 = vmatpush1.msra.mxu0 %v702
        %961 = vmatprep.subr.mxu0 0.0
        %962 = vmatpush1.msra.mxu0 0.0
        %963 = vmatprep.subr.mxu0 0.0
        %964 = vmatpush1.msra.mxu0 0.0
        %965 = vmatprep.subr.mxu0 0.0
        %966 = vmatpush1.msra.mxu0 0.0
        %967 = vmatprep.subr.mxu0 0.0
        %968 = vmatpush1.msra.mxu0 0.0
        %969 = vmatprep.subr.mxu0 0.0
        %970 = vmatpush1.msra.mxu0 0.0
        %971 = vmatprep.subr.mxu0 0.0
        %972 = vmatpush1.msra.mxu0 0.0
        %973 = vmatprep.subr.mxu0 0.0
        %974 = vmatpush1.msra.mxu0 0.0
        %975 = vmatprep.subr.mxu0 0.0
        %976 = vmatpush1.msra.mxu0 0.0
        %977 = vmatprep.subr.mxu0 0.0
        %978 = vmatpush1.msra.mxu0 0.0
        %979 = vmatprep.subr.mxu0 0.0
        %980 = vmatpush1.msra.mxu0 0.0
        %981 = vmatprep.subr.mxu0 0.0
        %982 = vmatpush1.msra.mxu0 0.0
        %983 = vmatprep.subr.mxu0 0.0
        %984 = vmatpush1.msra.mxu0 0.0
        %985 = vmatprep.subr.mxu0 0.0
        %986 = vmatpush1.msra.mxu0 0.0
        %987 = vmatprep.subr.mxu0 0.0
        %988 = vmatpush1.msra.mxu0 0.0
        %989 = vmatprep.subr.mxu0 0.0
        %990 = vmatpush1.msra.mxu0 0.0
        %991 = vmatprep.subr.mxu0 0.0
        %992 = vmatpush1.msra.mxu0 0.0
        %993 = vmatprep.subr.mxu0 0.0
        %994 = vmatpush1.msra.mxu0 0.0
        %995 = vmatprep.subr.mxu0 0.0
        %996 = vmatpush1.msra.mxu0 0.0
        %997 = vmatprep.subr.mxu0 0.0
        %998 = vmatpush1.msra.mxu0 0.0
        %999 = vmatprep.subr.mxu0 0.0
        %1000 = vmatpush1.msra.mxu0 0.0
        %1001 = vmatprep.subr.mxu0 0.0
        %1002 = vmatpush1.msra.mxu0 0.0
        %1003 = vmatprep.subr.mxu0 0.0
        %1004 = vmatpush1.msra.mxu0 0.0
        %1005 = vmatprep.subr.mxu0 0.0
        %1006 = vmatpush1.msra.mxu0 0.0
        %1007 = vmatprep.subr.mxu0 0.0
        %1008 = vmatpush1.msra.mxu0 0.0
        %1009 = vmatprep.subr.mxu0 0.0
        %1010 = vmatpush1.msra.mxu0 0.0
        %1011 = vmatprep.subr.mxu0 0.0
        %1012 = vmatpush1.msra.mxu0 0.0
        %1013 = vmatprep.subr.mxu0 0.0
        %1014 = vmatpush1.msra.mxu0 0.0
        %1015 = vmatprep.subr.mxu0 0.0
        %1016 = vmatpush1.msra.mxu0 0.0
        %1017 = vmatprep.subr.mxu0 0.0
        %1018 = vmatpush1.msra.mxu0 0.0
        %1019 = vmatprep.subr.mxu0 0.0
        %1020 = vmatpush1.msra.mxu0 0.0
        %1021 = vmatprep.mubr.f32.mxu0 0.0
        %1022 = vmatmul.mubr.f32.gmra.mrb[0].mxu0 %v952
        %v1023 = vpop.f32.mrb[0].mxu0
        %v1024 = vadd.f32 0.0, %v1023
        %v1025 = vpop.f32.mrb[0].mxu0
        %1026 = vmatprep.mubr.f32.mxu0 0.0
        %1027 = vmatmul.mubr.f32.gmra.mrb[0].mxu0 %v955
        %v1028 = vpop.f32.mrb[0].mxu0
        %v1029 = vadd.f32 0.0, %v1028
        %v1030 = vpop.f32.mrb[0].mxu0
        %1031 = vdwg.mxu0
        %v1032 = vrcp.pop %v947
        %v1033 = vrcp.pop %v950
        %v1034 = vmul.f32 %v1024, %v1032
        %v1035 = vmul.f32 %v1029, %v1033
        %v1037 = vlaneseq
        %v1038 = vshrl.u32 %v1037, 7
        %v1039 = vsub.s32 0, %v1038
        %v1040 = vrot.slane %v897, %v1039
        %v1042 = vadd.f32 %v1034, %v1040
        %v1043 = vadd.f32 %v1035, %v1040
        %v1044 = vtanh.pop %v1042
        %v1045 = vtanh.pop %v1043
        %1046 = vset.pattern.permute.xlu0 1
        %1047 = vperm.xlu0 %1046, %v781
        %v1048 = vpop.permute.xlu0 %1047
        %1050 = vset.pattern.permute.xlu0 1
        %1051 = vperm.xlu0 %1050, %v786
        %v1052 = vpop.permute.xlu0 %1051
        %v1054 = vlaneseq
        %v1055 = vshrl.u32 %v1054, 7
        %v1056 = vsub.s32 1, %v1055
        %v1057 = vrot.slane %v893, %v1056
        %v1058 = vadd.f32 %v1048, %v1057
        %v1059 = vadd.f32 %v1052, %v1057
        %1060 = vset.pattern.permute.xlu0 1
        %1061 = vperm.xlu0 %1060, %v918
        %v1062 = vpop.permute.xlu0 %1061
        %v1064 = vmul.f32 %v618, %v1062
        %v1065 = vmul.f32 %v619, %v1062
        %v1066 = vadd.f32 %v1058, %v1064
        %v1067 = vadd.f32 %v1059, %v1065
        %v1068 = vmul.f32 %v1066, 0.2
        %v1069 = vmul.f32 %v1067, 0.2
        %v1070 = vmax.f32 %v1066, %v1068
        %v1071 = vmax.f32 %v1067, %v1069
        %v1072 = vadd.f32 %v1070, %v616
        %v1073 = vadd.f32 %v1071, %v617
        %v1074 = vsel %vm707, %v1072, -inf
        %1075 = vmax.xlane.f32.xlu0 %v1074
        %v1076 = vpop.xlane.xlu0 %1075
        %v1077 = vsel %vm707, %v1073, -inf
        %1078 = vmax.xlane.f32.xlu0 %v1077
        %v1079 = vpop.xlane.xlu0 %1078
        %v1080 = vsub.f32 %v1072, %v1076
        %v1081 = vsub.f32 %v1073, %v1079
        %v1082 = vmul.f32 %v1080, 1.442695
        %v1083 = vpow.pop %v1082
        %v1084 = vmul.f32 %v1081, 1.442695
        %v1085 = vpow.pop %v1084
        %v1086 = vsel %vm707, %v1083, 0.0
        %1087 = vadd.xlane.f32.xlu0 %v1086
        %v1088 = vpop.xlane.xlu0 %1087
        %v1089 = vsel %vm707, %v1085, 0.0
        %1090 = vadd.xlane.f32.xlu0 %v1089
        %v1091 = vpop.xlane.xlu0 %1090
        %1092 = vrot.lane.b32.xlu0 %v697, 120
        %v1093 = vpop.permute.xlu0 %1092
        %1094 = vrot.lane.b32.xlu0 %v702, 120
        %v1095 = vpop.permute.xlu0 %1094
        %v1099 = vsel %vm707, %v1083, 0
        %v1102 = vsel %vm707, %v1085, 0
        %1104 = vmatprep.subr.mxu0 0.0
        %1105 = vmatpush1.msra.mxu0 %v1093
        %1106 = vmatprep.subr.mxu0 0.0
        %1107 = vmatpush1.msra.mxu0 %v1095
        %1108 = vmatprep.subr.mxu0 0.0
        %1109 = vmatpush1.msra.mxu0 0.0
        %1110 = vmatprep.subr.mxu0 0.0
        %1111 = vmatpush1.msra.mxu0 0.0
        %1112 = vmatprep.subr.mxu0 0.0
        %1113 = vmatpush1.msra.mxu0 0.0
        %1114 = vmatprep.subr.mxu0 0.0
        %1115 = vmatpush1.msra.mxu0 0.0
        %1116 = vmatprep.subr.mxu0 0.0
        %1117 = vmatpush1.msra.mxu0 0.0
        %1118 = vmatprep.subr.mxu0 0.0
        %1119 = vmatpush1.msra.mxu0 0.0
        %1120 = vmatprep.subr.mxu0 0.0
        %1121 = vmatpush1.msra.mxu0 0.0
        %1122 = vmatprep.subr.mxu0 0.0
        %1123 = vmatpush1.msra.mxu0 0.0
        %1124 = vmatprep.subr.mxu0 0.0
        %1125 = vmatpush1.msra.mxu0 0.0
        %1126 = vmatprep.subr.mxu0 0.0
        %1127 = vmatpush1.msra.mxu0 0.0
        %1128 = vmatprep.subr.mxu0 0.0
        %1129 = vmatpush1.msra.mxu0 0.0
        %1130 = vmatprep.subr.mxu0 0.0
        %1131 = vmatpush1.msra.mxu0 0.0
        %1132 = vmatprep.subr.mxu0 0.0
        %1133 = vmatpush1.msra.mxu0 0.0
        %1134 = vmatprep.subr.mxu0 0.0
        %1135 = vmatpush1.msra.mxu0 0.0
        %1136 = vmatprep.subr.mxu0 0.0
        %1137 = vmatpush1.msra.mxu0 0.0
        %1138 = vmatprep.subr.mxu0 0.0
        %1139 = vmatpush1.msra.mxu0 0.0
        %1140 = vmatprep.subr.mxu0 0.0
        %1141 = vmatpush1.msra.mxu0 0.0
        %1142 = vmatprep.subr.mxu0 0.0
        %1143 = vmatpush1.msra.mxu0 0.0
        %1144 = vmatprep.subr.mxu0 0.0
        %1145 = vmatpush1.msra.mxu0 0.0
        %1146 = vmatprep.subr.mxu0 0.0
        %1147 = vmatpush1.msra.mxu0 0.0
        %1148 = vmatprep.subr.mxu0 0.0
        %1149 = vmatpush1.msra.mxu0 0.0
        %1150 = vmatprep.subr.mxu0 0.0
        %1151 = vmatpush1.msra.mxu0 0.0
        %1152 = vmatprep.subr.mxu0 0.0
        %1153 = vmatpush1.msra.mxu0 0.0
        %1154 = vmatprep.subr.mxu0 0.0
        %1155 = vmatpush1.msra.mxu0 0.0
        %1156 = vmatprep.subr.mxu0 0.0
        %1157 = vmatpush1.msra.mxu0 0.0
        %1158 = vmatprep.subr.mxu0 0.0
        %1159 = vmatpush1.msra.mxu0 0.0
        %1160 = vmatprep.subr.mxu0 0.0
        %1161 = vmatpush1.msra.mxu0 0.0
        %1162 = vmatprep.subr.mxu0 0.0
        %1163 = vmatpush1.msra.mxu0 0.0
        %1164 = vmatprep.subr.mxu0 0.0
        %1165 = vmatpush1.msra.mxu0 0.0
        %1166 = vmatprep.subr.mxu0 0.0
        %1167 = vmatpush1.msra.mxu0 0.0
        %1168 = vmatprep.mubr.f32.mxu0 0.0
        %1169 = vmatmul.mubr.f32.gmra.mrb[0].mxu0 %v1099
        %v1170 = vpop.f32.mrb[0].mxu0
        %v1171 = vadd.f32 0.0, %v1170
        %v1172 = vpop.f32.mrb[0].mxu0
        %1173 = vmatprep.mubr.f32.mxu0 0.0
        %1174 = vmatmul.mubr.f32.gmra.mrb[0].mxu0 %v1102
        %v1175 = vpop.f32.mrb[0].mxu0
        %v1176 = vadd.f32 0.0, %v1175
        %v1177 = vpop.f32.mrb[0].mxu0
        %1178 = vdwg.mxu0
        %v1179 = vrcp.pop %v1088
        %v1180 = vrcp.pop %v1091
        %v1181 = vmul.f32 %v1171, %v1179
        %v1182 = vmul.f32 %v1176, %v1180
        %1183 = vrot.lane.b32.xlu0 %v1040, 120
        %v1184 = vpop.permute.xlu0 %1183
        %v1186 = vadd.f32 %v1181, %v1184
        %v1187 = vadd.f32 %v1182, %v1184
        %v1188 = vtanh.pop %v1186
        %v1189 = vtanh.pop %v1187
        %v1190 = vld [vmem:[%s8] sm:$0xff]
        %v1191 = vld [vmem:[%s8 + $0x8] sm:$0xff]
        %v1193 = vsel %vm623, %v1188, 0
        %v1196 = vsel %vm623, %v1189, 0
        %1198 = vmatprep.subr.mxu0 0.0
        %1199 = vmatpush1.msra.mxu0 %v1191
        %1200 = vmatprep.subr.mxu0 0.0
        %1201 = vmatpush1.msra.mxu0 0.0
        %1202 = vmatprep.subr.mxu0 0.0
        %1203 = vmatpush1.msra.mxu0 0.0
        %1204 = vmatprep.subr.mxu0 0.0
        %1205 = vmatpush1.msra.mxu0 0.0
        %1206 = vmatprep.subr.mxu0 0.0
        %1207 = vmatpush1.msra.mxu0 0.0
        %1208 = vmatprep.subr.mxu0 0.0
        %1209 = vmatpush1.msra.mxu0 0.0
        %1210 = vmatprep.subr.mxu0 0.0
        %1211 = vmatpush1.msra.mxu0 0.0
        %1212 = vmatprep.subr.mxu0 0.0
        %1213 = vmatpush1.msra.mxu0 0.0
        %1214 = vmatprep.subr.mxu0 0.0
        %1215 = vmatpush1.msra.mxu0 0.0
        %1216 = vmatprep.subr.mxu0 0.0
        %1217 = vmatpush1.msra.mxu0 0.0
        %1218 = vmatprep.subr.mxu0 0.0
        %1219 = vmatpush1.msra.mxu0 0.0
        %1220 = vmatprep.subr.mxu0 0.0
        %1221 = vmatpush1.msra.mxu0 0.0
        %1222 = vmatprep.subr.mxu0 0.0
        %1223 = vmatpush1.msra.mxu0 0.0
        %1224 = vmatprep.subr.mxu0 0.0
        %1225 = vmatpush1.msra.mxu0 0.0
        %1226 = vmatprep.subr.mxu0 0.0
        %1227 = vmatpush1.msra.mxu0 0.0
        %1228 = vmatprep.subr.mxu0 0.0
        %1229 = vmatpush1.msra.mxu0 0.0
        %1230 = vmatprep.subr.mxu0 0.0
        %1231 = vmatpush1.msra.mxu0 0.0
        %1232 = vmatprep.subr.mxu0 0.0
        %1233 = vmatpush1.msra.mxu0 0.0
        %1234 = vmatprep.subr.mxu0 0.0
        %1235 = vmatpush1.msra.mxu0 0.0
        %1236 = vmatprep.subr.mxu0 0.0
        %1237 = vmatpush1.msra.mxu0 0.0
        %1238 = vmatprep.subr.mxu0 0.0
        %1239 = vmatpush1.msra.mxu0 0.0
        %1240 = vmatprep.subr.mxu0 0.0
        %1241 = vmatpush1.msra.mxu0 0.0
        %1242 = vmatprep.subr.mxu0 0.0
        %1243 = vmatpush1.msra.mxu0 0.0
        %1244 = vmatprep.subr.mxu0 0.0
        %1245 = vmatpush1.msra.mxu0 0.0
        %1246 = vmatprep.subr.mxu0 0.0
        %1247 = vmatpush1.msra.mxu0 0.0
        %1248 = vmatprep.subr.mxu0 0.0
        %1249 = vmatpush1.msra.mxu0 0.0
        %1250 = vmatprep.subr.mxu0 0.0
        %1251 = vmatpush1.msra.mxu0 0.0
        %1252 = vmatprep.subr.mxu0 0.0
        %1253 = vmatpush1.msra.mxu0 0.0
        %1254 = vmatprep.subr.mxu0 0.0
        %1255 = vmatpush1.msra.mxu0 0.0
        %1256 = vmatprep.subr.mxu0 0.0
        %1257 = vmatpush1.msra.mxu0 0.0
        %1258 = vmatprep.subr.mxu0 0.0
        %1259 = vmatpush1.msra.mxu0 0.0
        %1260 = vmatprep.subr.mxu0 0.0
        %1261 = vmatpush1.msra.mxu0 0.0
        %1262 = vmatprep.mubr.f32.mxu0 0.0
        %1263 = vmatmul.mubr.f32.gmra.mrb[0].mxu0 %v1193
        %v1264 = vpop.f32.mrb[0].mxu0
        %v1265 = vadd.f32 0.0, %v1264
        %v1266 = vpop.f32.mrb[0].mxu0
        %1267 = vmatprep.mubr.f32.mxu0 0.0
        %1268 = vmatmul.mubr.f32.gmra.mrb[0].mxu0 %v1196
        %v1269 = vpop.f32.mrb[0].mxu0
        %v1270 = vadd.f32 0.0, %v1269
        %v1271 = vpop.f32.mrb[0].mxu0
        %1272 = vdwg.mxu0
        %v1274 = vsel %vm623, %v1044, 0
        %v1277 = vsel %vm623, %v1045, 0
        %1279 = vmatprep.subr.mxu0 0.0
        %1280 = vmatpush1.msra.mxu0 %v1190
        %1281 = vmatprep.subr.mxu0 0.0
        %1282 = vmatpush1.msra.mxu0 0.0
        %1283 = vmatprep.subr.mxu0 0.0
        %1284 = vmatpush1.msra.mxu0 0.0
        %1285 = vmatprep.subr.mxu0 0.0
        %1286 = vmatpush1.msra.mxu0 0.0
        %1287 = vmatprep.subr.mxu0 0.0
        %1288 = vmatpush1.msra.mxu0 0.0
        %1289 = vmatprep.subr.mxu0 0.0
        %1290 = vmatpush1.msra.mxu0 0.0
        %1291 = vmatprep.subr.mxu0 0.0
        %1292 = vmatpush1.msra.mxu0 0.0
        %1293 = vmatprep.subr.mxu0 0.0
        %1294 = vmatpush1.msra.mxu0 0.0
        %1295 = vmatprep.subr.mxu0 0.0
        %1296 = vmatpush1.msra.mxu0 0.0
        %1297 = vmatprep.subr.mxu0 0.0
        %1298 = vmatpush1.msra.mxu0 0.0
        %1299 = vmatprep.subr.mxu0 0.0
        %1300 = vmatpush1.msra.mxu0 0.0
        %1301 = vmatprep.subr.mxu0 0.0
        %1302 = vmatpush1.msra.mxu0 0.0
        %1303 = vmatprep.subr.mxu0 0.0
        %1304 = vmatpush1.msra.mxu0 0.0
        %1305 = vmatprep.subr.mxu0 0.0
        %1306 = vmatpush1.msra.mxu0 0.0
        %1307 = vmatprep.subr.mxu0 0.0
        %1308 = vmatpush1.msra.mxu0 0.0
        %1309 = vmatprep.subr.mxu0 0.0
        %1310 = vmatpush1.msra.mxu0 0.0
        %1311 = vmatprep.subr.mxu0 0.0
        %1312 = vmatpush1.msra.mxu0 0.0
        %1313 = vmatprep.subr.mxu0 0.0
        %1314 = vmatpush1.msra.mxu0 0.0
        %1315 = vmatprep.subr.mxu0 0.0
        %1316 = vmatpush1.msra.mxu0 0.0
        %1317 = vmatprep.subr.mxu0 0.0
        %1318 = vmatpush1.msra.mxu0 0.0
        %1319 = vmatprep.subr.mxu0 0.0
        %1320 = vmatpush1.msra.mxu0 0.0
        %1321 = vmatprep.subr.mxu0 0.0
        %1322 = vmatpush1.msra.mxu0 0.0
        %1323 = vmatprep.subr.mxu0 0.0
        %1324 = vmatpush1.msra.mxu0 0.0
        %1325 = vmatprep.subr.mxu0 0.0
        %1326 = vmatpush1.msra.mxu0 0.0
        %1327 = vmatprep.subr.mxu0 0.0
        %1328 = vmatpush1.msra.mxu0 0.0
        %1329 = vmatprep.subr.mxu0 0.0
        %1330 = vmatpush1.msra.mxu0 0.0
        %1331 = vmatprep.subr.mxu0 0.0
        %1332 = vmatpush1.msra.mxu0 0.0
        %1333 = vmatprep.subr.mxu0 0.0
        %1334 = vmatpush1.msra.mxu0 0.0
        %1335 = vmatprep.subr.mxu0 0.0
        %1336 = vmatpush1.msra.mxu0 0.0
        %1337 = vmatprep.subr.mxu0 0.0
        %1338 = vmatpush1.msra.mxu0 0.0
        %1339 = vmatprep.subr.mxu0 0.0
        %1340 = vmatpush1.msra.mxu0 0.0
        %1341 = vmatprep.subr.mxu0 0.0
        %1342 = vmatpush1.msra.mxu0 0.0
        %1343 = vmatprep.mubr.f32.mxu0 0.0
        %1344 = vmatmul.mubr.f32.gmra.mrb[0].mxu0 %v1274
        %v1345 = vpop.f32.mrb[0].mxu0
        %v1346 = vadd.f32 %v1265, %v1345
        %v1347 = vpop.f32.mrb[0].mxu0
        %1348 = vmatprep.mubr.f32.mxu0 0.0
        %1349 = vmatmul.mubr.f32.gmra.mrb[0].mxu0 %v1277
        %v1350 = vpop.f32.mrb[0].mxu0
        %v1351 = vadd.f32 %v1270, %v1350
        %v1352 = vpop.f32.mrb[0].mxu0
        %1353 = vdwg.mxu0
        %v1354 = vld [vmem:[%s10] sm:$0xff]
        %v1355 = vld [vmem:[%s10 + $0x8] sm:$0xff]
        %v1357 = vsel %vm707, %v1346, 0
        %v1360 = vsel %vm707, %v1351, 0
        %1362 = vmatprep.subr.mxu0 0.0
        %1363 = vmatpush1.msra.mxu0 %v1354
        %1364 = vmatprep.subr.mxu0 0.0
        %1365 = vmatpush1.msra.mxu0 %v1355
        %1366 = vmatprep.subr.mxu0 0.0
        %1367 = vmatpush1.msra.mxu0 0.0
        %1368 = vmatprep.subr.mxu0 0.0
        %1369 = vmatpush1.msra.mxu0 0.0
        %1370 = vmatprep.subr.mxu0 0.0
        %1371 = vmatpush1.msra.mxu0 0.0
        %1372 = vmatprep.subr.mxu0 0.0
        %1373 = vmatpush1.msra.mxu0 0.0
        %1374 = vmatprep.subr.mxu0 0.0
        %1375 = vmatpush1.msra.mxu0 0.0
        %1376 = vmatprep.subr.mxu0 0.0
        %1377 = vmatpush1.msra.mxu0 0.0
        %1378 = vmatprep.subr.mxu0 0.0
        %1379 = vmatpush1.msra.mxu0 0.0
        %1380 = vmatprep.subr.mxu0 0.0
        %1381 = vmatpush1.msra.mxu0 0.0
        %1382 = vmatprep.subr.mxu0 0.0
        %1383 = vmatpush1.msra.mxu0 0.0
        %1384 = vmatprep.subr.mxu0 0.0
        %1385 = vmatpush1.msra.mxu0 0.0
        %1386 = vmatprep.subr.mxu0 0.0
        %1387 = vmatpush1.msra.mxu0 0.0
        %1388 = vmatprep.subr.mxu0 0.0
        %1389 = vmatpush1.msra.mxu0 0.0
        %1390 = vmatprep.subr.mxu0 0.0
        %1391 = vmatpush1.msra.mxu0 0.0
        %1392 = vmatprep.subr.mxu0 0.0
        %1393 = vmatpush1.msra.mxu0 0.0
        %1394 = vmatprep.subr.mxu0 0.0
        %1395 = vmatpush1.msra.mxu0 0.0
        %1396 = vmatprep.subr.mxu0 0.0
        %1397 = vmatpush1.msra.mxu0 0.0
        %1398 = vmatprep.subr.mxu0 0.0
        %1399 = vmatpush1.msra.mxu0 0.0
        %1400 = vmatprep.subr.mxu0 0.0
        %1401 = vmatpush1.msra.mxu0 0.0
        %1402 = vmatprep.subr.mxu0 0.0
        %1403 = vmatpush1.msra.mxu0 0.0
        %1404 = vmatprep.subr.mxu0 0.0
        %1405 = vmatpush1.msra.mxu0 0.0
        %1406 = vmatprep.subr.mxu0 0.0
        %1407 = vmatpush1.msra.mxu0 0.0
        %1408 = vmatprep.subr.mxu0 0.0
        %1409 = vmatpush1.msra.mxu0 0.0
        %1410 = vmatprep.subr.mxu0 0.0
        %1411 = vmatpush1.msra.mxu0 0.0
        %1412 = vmatprep.subr.mxu0 0.0
        %1413 = vmatpush1.msra.mxu0 0.0
        %1414 = vmatprep.subr.mxu0 0.0
        %1415 = vmatpush1.msra.mxu0 0.0
        %1416 = vmatprep.subr.mxu0 0.0
        %1417 = vmatpush1.msra.mxu0 0.0
        %1418 = vmatprep.subr.mxu0 0.0
        %1419 = vmatpush1.msra.mxu0 0.0
        %1420 = vmatprep.subr.mxu0 0.0
        %1421 = vmatpush1.msra.mxu0 0.0
        %1422 = vmatprep.subr.mxu0 0.0
        %1423 = vmatpush1.msra.mxu0 0.0
        %1424 = vmatprep.subr.mxu0 0.0
        %1425 = vmatpush1.msra.mxu0 0.0
        %1426 = vmatprep.mubr.f32.mxu0 0.0
        %1427 = vmatmul.mubr.f32.gmra.mrb[0].mxu0 %v1357
        %v1428 = vpop.f32.mrb[0].mxu0
        %v1429 = vadd.f32 0.0, %v1428
        %v1430 = vpop.f32.mrb[0].mxu0
        %1431 = vmatprep.mubr.f32.mxu0 0.0
        %1432 = vmatmul.mubr.f32.gmra.mrb[0].mxu0 %v1360
        %v1433 = vpop.f32.mrb[0].mxu0
        %v1434 = vadd.f32 0.0, %v1433
        %v1435 = vpop.f32.mrb[0].mxu0
        %1436 = vdwg.mxu0
        %v1437 = vld [vmem:[%s9] sm:$0xff]
        %v1438 = vld [vmem:[%s9 + $0x8] sm:$0xff]
        %1439 = vxpose.xlu0.b32.start [1/16] %v1437, 128
        %1440 = vxpose.xlu0.b32.cont [2/16] %v1438, 128
        %1441 = vxpose.xlu0.b32.cont [3/16] 0.0, 128
        %1442 = vxpose.xlu0.b32.cont [4/16] 0.0, 128
        %1443 = vxpose.xlu0.b32.cont [5/16] 0.0, 128
        %1444 = vxpose.xlu0.b32.cont [6/16] 0.0, 128
        %1445 = vxpose.xlu0.b32.cont [7/16] 0.0, 128
        %1446 = vxpose.xlu0.b32.cont [8/16] 0.0, 128
        %1447 = vxpose.xlu0.b32.cont [9/16] 0.0, 128
        %1448 = vxpose.xlu0.b32.cont [10/16] 0.0, 128
        %1449 = vxpose.xlu0.b32.cont [11/16] 0.0, 128
        %1450 = vxpose.xlu0.b32.cont [12/16] 0.0, 128
        %1451 = vxpose.xlu0.b32.cont [13/16] 0.0, 128
        %1452 = vxpose.xlu0.b32.cont [14/16] 0.0, 128
        %1453 = vxpose.xlu0.b32.cont [15/16] 0.0, 128
        %1454 = vxpose.xlu0.b32.end [16/16] 0.0, 128
        %v1455 = vpop.trf.xlu0
        %v1456 = vpop.trf.xlu0
        %v1457 = vpop.trf.xlu0
        %v1458 = vpop.trf.xlu0
        %v1459 = vpop.trf.xlu0
        %v1460 = vpop.trf.xlu0
        %v1461 = vpop.trf.xlu0
        %v1462 = vpop.trf.xlu0
        %v1463 = vpop.trf.xlu0
        %v1464 = vpop.trf.xlu0
        %v1465 = vpop.trf.xlu0
        %v1466 = vpop.trf.xlu0
        %v1467 = vpop.trf.xlu0
        %v1468 = vpop.trf.xlu0
        %v1469 = vpop.trf.xlu0
        %v1470 = vpop.trf.xlu0
        %v1472 = vsel %vm707, %v1455, 0
        %1474 = vmatprep.subr.mxu0 0.0
        %1475 = vmatpush1.xpose.msra.mxu0 %v1357
        %1476 = vmatprep.subr.mxu0 0.0
        %1477 = vmatpush1.xpose.msra.mxu0 %v1360
        %1478 = vmatprep.subr.mxu0 0.0
        %1479 = vmatpush1.xpose.msra.mxu0 0.0
        %1480 = vmatprep.subr.mxu0 0.0
        %1481 = vmatpush1.xpose.msra.mxu0 0.0
        %1482 = vmatprep.subr.mxu0 0.0
        %1483 = vmatpush1.xpose.msra.mxu0 0.0
        %1484 = vmatprep.subr.mxu0 0.0
        %1485 = vmatpush1.xpose.msra.mxu0 0.0
        %1486 = vmatprep.subr.mxu0 0.0
        %1487 = vmatpush1.xpose.msra.mxu0 0.0
        %1488 = vmatprep.subr.mxu0 0.0
        %1489 = vmatpush1.xpose.msra.mxu0 0.0
        %1490 = vmatprep.subr.mxu0 0.0
        %1491 = vmatpush1.xpose.msra.mxu0 0.0
        %1492 = vmatprep.subr.mxu0 0.0
        %1493 = vmatpush1.xpose.msra.mxu0 0.0
        %1494 = vmatprep.subr.mxu0 0.0
        %1495 = vmatpush1.xpose.msra.mxu0 0.0
        %1496 = vmatprep.subr.mxu0 0.0
        %1497 = vmatpush1.xpose.msra.mxu0 0.0
        %1498 = vmatprep.subr.mxu0 0.0
        %1499 = vmatpush1.xpose.msra.mxu0 0.0
        %1500 = vmatprep.subr.mxu0 0.0
        %1501 = vmatpush1.xpose.msra.mxu0 0.0
        %1502 = vmatprep.subr.mxu0 0.0
        %1503 = vmatpush1.xpose.msra.mxu0 0.0
        %1504 = vmatprep.subr.mxu0 0.0
        %1505 = vmatpush1.xpose.msra.mxu0 0.0
        %1506 = vmatprep.subr.mxu0 0.0
        %1507 = vmatpush1.xpose.msra.mxu0 0.0
        %1508 = vmatprep.subr.mxu0 0.0
        %1509 = vmatpush1.xpose.msra.mxu0 0.0
        %1510 = vmatprep.subr.mxu0 0.0
        %1511 = vmatpush1.xpose.msra.mxu0 0.0
        %1512 = vmatprep.subr.mxu0 0.0
        %1513 = vmatpush1.xpose.msra.mxu0 0.0
        %1514 = vmatprep.subr.mxu0 0.0
        %1515 = vmatpush1.xpose.msra.mxu0 0.0
        %1516 = vmatprep.subr.mxu0 0.0
        %1517 = vmatpush1.xpose.msra.mxu0 0.0
        %1518 = vmatprep.subr.mxu0 0.0
        %1519 = vmatpush1.xpose.msra.mxu0 0.0
        %1520 = vmatprep.subr.mxu0 0.0
        %1521 = vmatpush1.xpose.msra.mxu0 0.0
        %1522 = vmatprep.subr.mxu0 0.0
        %1523 = vmatpush1.xpose.msra.mxu0 0.0
        %1524 = vmatprep.subr.mxu0 0.0
        %1525 = vmatpush1.xpose.msra.mxu0 0.0
        %1526 = vmatprep.subr.mxu0 0.0
        %1527 = vmatpush1.xpose.msra.mxu0 0.0
        %1528 = vmatprep.subr.mxu0 0.0
        %1529 = vmatpush1.xpose.msra.mxu0 0.0
        %1530 = vmatprep.subr.mxu0 0.0
        %1531 = vmatpush1.xpose.msra.mxu0 0.0
        %1532 = vmatprep.subr.mxu0 0.0
        %1533 = vmatpush1.xpose.msra.mxu0 0.0
        %1534 = vmatprep.subr.mxu0 0.0
        %1535 = vmatpush1.xpose.msra.mxu0 0.0
        %1536 = vmatprep.subr.mxu0 0.0
        %1537 = vmatpush1.xpose.msra.mxu0 0.0
        %1538 = vmatprep.mubr.f32.mxu0 0.0
        %1539 = vmatmul.mubr.f32.gmra.mrb[0].mxu0 %v1472
        %v1540 = vpop.f32.mrb[0].mxu0
        %v1541 = vadd.f32 0.0, %v1540
        %v1542 = vpop.f32.mrb[0].mxu0
        %1543 = vdwg.mxu0
        %v1544 = vld [vmem:[%s11] sm:$0x1]
        %v1545 = vld [vmem:[%s12] sm:$0x1]
        %1547 = vset.pattern.permute.xlu0 0
        %1548 = vperm.xlu0 %1547, %v1429
        %v1549 = vpop.permute.xlu0 %1548
        %1552 = vset.pattern.permute.xlu0 0
        %1553 = vperm.xlu0 %1552, %v1434
        %v1554 = vpop.permute.xlu0 %1553
        %v1556 = vlaneseq
        %v1557 = vshrl.u32 %v1556, 7
        %v1558 = vsub.s32 0, %v1557
        %v1559 = vrot.slane %v1541, %v1558
        %v1560 = vadd.f32 %v1549, %v1559
        %v1561 = vadd.f32 %v1554, %v1559
        %v1563 = vlaneseq
        %v1564 = vshrl.u32 %v1563, 7
        %v1565 = vsub.s32 0, %v1564
        %v1566 = vrot.slane %v1544, %v1565
        %1567 = vset.pattern.permute.xlu0 0
        %1568 = vperm.xlu0 %1567, %v1566
        %v1569 = vpop.permute.xlu0 %1568
        %v1571 = vmul.f32 %v618, %v1569
        %v1572 = vmul.f32 %v619, %v1569
        %v1573 = vadd.f32 %v1560, %v1571
        %v1574 = vadd.f32 %v1561, %v1572
        %v1575 = vmul.f32 %v1573, 0.2
        %v1576 = vmul.f32 %v1574, 0.2
        %v1577 = vmax.f32 %v1573, %v1575
        %v1578 = vmax.f32 %v1574, %v1576
        %v1579 = vadd.f32 %v1577, %v616
        %v1580 = vadd.f32 %v1578, %v617
        %v1581 = vsel %vm707, %v1579, -inf
        %1582 = vmax.xlane.f32.xlu0 %v1581
        %v1583 = vpop.xlane.xlu0 %1582
        %v1584 = vsel %vm707, %v1580, -inf
        %1585 = vmax.xlane.f32.xlu0 %v1584
        %v1586 = vpop.xlane.xlu0 %1585
        %v1587 = vsub.f32 %v1579, %v1583
        %v1588 = vsub.f32 %v1580, %v1586
        %v1589 = vmul.f32 %v1587, 1.442695
        %v1590 = vpow.pop %v1589
        %v1591 = vmul.f32 %v1588, 1.442695
        %v1592 = vpow.pop %v1591
        %v1593 = vsel %vm707, %v1590, 0.0
        %1594 = vadd.xlane.f32.xlu0 %v1593
        %v1595 = vpop.xlane.xlu0 %1594
        %v1596 = vsel %vm707, %v1592, 0.0
        %1597 = vadd.xlane.f32.xlu0 %v1596
        %v1598 = vpop.xlane.xlu0 %1597
        %v1600 = vsel %vm707, %v1590, 0
        %v1603 = vsel %vm707, %v1592, 0
        %1605 = vmatprep.subr.mxu0 0.0
        %1606 = vmatpush1.msra.mxu0 %v1346
        %1607 = vmatprep.subr.mxu0 0.0
        %1608 = vmatpush1.msra.mxu0 %v1351
        %1609 = vmatprep.subr.mxu0 0.0
        %1610 = vmatpush1.msra.mxu0 0.0
        %1611 = vmatprep.subr.mxu0 0.0
        %1612 = vmatpush1.msra.mxu0 0.0
        %1613 = vmatprep.subr.mxu0 0.0
        %1614 = vmatpush1.msra.mxu0 0.0
        %1615 = vmatprep.subr.mxu0 0.0
        %1616 = vmatpush1.msra.mxu0 0.0
        %1617 = vmatprep.subr.mxu0 0.0
        %1618 = vmatpush1.msra.mxu0 0.0
        %1619 = vmatprep.subr.mxu0 0.0
        %1620 = vmatpush1.msra.mxu0 0.0
        %1621 = vmatprep.subr.mxu0 0.0
        %1622 = vmatpush1.msra.mxu0 0.0
        %1623 = vmatprep.subr.mxu0 0.0
        %1624 = vmatpush1.msra.mxu0 0.0
        %1625 = vmatprep.subr.mxu0 0.0
        %1626 = vmatpush1.msra.mxu0 0.0
        %1627 = vmatprep.subr.mxu0 0.0
        %1628 = vmatpush1.msra.mxu0 0.0
        %1629 = vmatprep.subr.mxu0 0.0
        %1630 = vmatpush1.msra.mxu0 0.0
        %1631 = vmatprep.subr.mxu0 0.0
        %1632 = vmatpush1.msra.mxu0 0.0
        %1633 = vmatprep.subr.mxu0 0.0
        %1634 = vmatpush1.msra.mxu0 0.0
        %1635 = vmatprep.subr.mxu0 0.0
        %1636 = vmatpush1.msra.mxu0 0.0
        %1637 = vmatprep.subr.mxu0 0.0
        %1638 = vmatpush1.msra.mxu0 0.0
        %1639 = vmatprep.subr.mxu0 0.0
        %1640 = vmatpush1.msra.mxu0 0.0
        %1641 = vmatprep.subr.mxu0 0.0
        %1642 = vmatpush1.msra.mxu0 0.0
        %1643 = vmatprep.subr.mxu0 0.0
        %1644 = vmatpush1.msra.mxu0 0.0
        %1645 = vmatprep.subr.mxu0 0.0
        %1646 = vmatpush1.msra.mxu0 0.0
        %1647 = vmatprep.subr.mxu0 0.0
        %1648 = vmatpush1.msra.mxu0 0.0
        %1649 = vmatprep.subr.mxu0 0.0
        %1650 = vmatpush1.msra.mxu0 0.0
        %1651 = vmatprep.subr.mxu0 0.0
        %1652 = vmatpush1.msra.mxu0 0.0
        %1653 = vmatprep.subr.mxu0 0.0
        %1654 = vmatpush1.msra.mxu0 0.0
        %1655 = vmatprep.subr.mxu0 0.0
        %1656 = vmatpush1.msra.mxu0 0.0
        %1657 = vmatprep.subr.mxu0 0.0
        %1658 = vmatpush1.msra.mxu0 0.0
        %1659 = vmatprep.subr.mxu0 0.0
        %1660 = vmatpush1.msra.mxu0 0.0
        %1661 = vmatprep.subr.mxu0 0.0
        %1662 = vmatpush1.msra.mxu0 0.0
        %1663 = vmatprep.subr.mxu0 0.0
        %1664 = vmatpush1.msra.mxu0 0.0
        %1665 = vmatprep.subr.mxu0 0.0
        %1666 = vmatpush1.msra.mxu0 0.0
        %1667 = vmatprep.subr.mxu0 0.0
        %1668 = vmatpush1.msra.mxu0 0.0
        %1669 = vmatprep.mubr.f32.mxu0 0.0
        %1670 = vmatmul.mubr.f32.gmra.mrb[0].mxu0 %v1600
        %v1671 = vpop.f32.mrb[0].mxu0
        %v1672 = vadd.f32 0.0, %v1671
        %v1673 = vpop.f32.mrb[0].mxu0
        %1674 = vmatprep.mubr.f32.mxu0 0.0
        %1675 = vmatmul.mubr.f32.gmra.mrb[0].mxu0 %v1603
        %v1676 = vpop.f32.mrb[0].mxu0
        %v1677 = vadd.f32 0.0, %v1676
        %v1678 = vpop.f32.mrb[0].mxu0
        %1679 = vdwg.mxu0
        %v1680 = vrcp.pop %v1595
        %v1681 = vrcp.pop %v1598
        %v1682 = vmul.f32 %v1672, %v1680
        %v1683 = vmul.f32 %v1677, %v1681
        %v1685 = vlaneseq
        %v1686 = vshrl.u32 %v1685, 7
        %v1687 = vsub.s32 0, %v1686
        %v1688 = vrot.slane %v1545, %v1687
        %v1690 = vadd.f32 %v1682, %v1688
        %v1691 = vadd.f32 %v1683, %v1688
        %v1692 = vtanh.pop %v1690
        %v1693 = vtanh.pop %v1691
        %1694 = vset.pattern.permute.xlu0 1
        %1695 = vperm.xlu0 %1694, %v1429
        %v1696 = vpop.permute.xlu0 %1695
        %1698 = vset.pattern.permute.xlu0 1
        %1699 = vperm.xlu0 %1698, %v1434
        %v1700 = vpop.permute.xlu0 %1699
        %v1702 = vlaneseq
        %v1703 = vshrl.u32 %v1702, 7
        %v1704 = vsub.s32 1, %v1703
        %v1705 = vrot.slane %v1541, %v1704
        %v1706 = vadd.f32 %v1696, %v1705
        %v1707 = vadd.f32 %v1700, %v1705
        %1708 = vset.pattern.permute.xlu0 1
        %1709 = vperm.xlu0 %1708, %v1566
        %v1710 = vpop.permute.xlu0 %1709
        %v1712 = vmul.f32 %v618, %v1710
        %v1713 = vmul.f32 %v619, %v1710
        %v1714 = vadd.f32 %v1706, %v1712
        %v1715 = vadd.f32 %v1707, %v1713
        %v1716 = vmul.f32 %v1714, 0.2
        %v1717 = vmul.f32 %v1715, 0.2
        %v1718 = vmax.f32 %v1714, %v1716
        %v1719 = vmax.f32 %v1715, %v1717
        %v1720 = vadd.f32 %v1718, %v616
        %v1721 = vadd.f32 %v1719, %v617
        %v1722 = vsel %vm707, %v1720, -inf
        %1723 = vmax.xlane.f32.xlu0 %v1722
        %v1724 = vpop.xlane.xlu0 %1723
        %v1725 = vsel %vm707, %v1721, -inf
        %1726 = vmax.xlane.f32.xlu0 %v1725
        %v1727 = vpop.xlane.xlu0 %1726
        %v1728 = vsub.f32 %v1720, %v1724
        %v1729 = vsub.f32 %v1721, %v1727
        %v1730 = vmul.f32 %v1728, 1.442695
        %v1731 = vpow.pop %v1730
        %v1732 = vmul.f32 %v1729, 1.442695
        %v1733 = vpow.pop %v1732
        %v1734 = vsel %vm707, %v1731, 0.0
        %1735 = vadd.xlane.f32.xlu0 %v1734
        %v1736 = vpop.xlane.xlu0 %1735
        %v1737 = vsel %vm707, %v1733, 0.0
        %1738 = vadd.xlane.f32.xlu0 %v1737
        %v1739 = vpop.xlane.xlu0 %1738
        %1740 = vrot.lane.b32.xlu0 %v1346, 120
        %v1741 = vpop.permute.xlu0 %1740
        %1742 = vrot.lane.b32.xlu0 %v1351, 120
        %v1743 = vpop.permute.xlu0 %1742
        %v1747 = vsel %vm707, %v1731, 0
        %v1750 = vsel %vm707, %v1733, 0
        %1752 = vmatprep.subr.mxu0 0.0
        %1753 = vmatpush1.msra.mxu0 %v1741
        %1754 = vmatprep.subr.mxu0 0.0
        %1755 = vmatpush1.msra.mxu0 %v1743
        %1756 = vmatprep.subr.mxu0 0.0
        %1757 = vmatpush1.msra.mxu0 0.0
        %1758 = vmatprep.subr.mxu0 0.0
        %1759 = vmatpush1.msra.mxu0 0.0
        %1760 = vmatprep.subr.mxu0 0.0
        %1761 = vmatpush1.msra.mxu0 0.0
        %1762 = vmatprep.subr.mxu0 0.0
        %1763 = vmatpush1.msra.mxu0 0.0
        %1764 = vmatprep.subr.mxu0 0.0
        %1765 = vmatpush1.msra.mxu0 0.0
        %1766 = vmatprep.subr.mxu0 0.0
        %1767 = vmatpush1.msra.mxu0 0.0
        %1768 = vmatprep.subr.mxu0 0.0
        %1769 = vmatpush1.msra.mxu0 0.0
        %1770 = vmatprep.subr.mxu0 0.0
        %1771 = vmatpush1.msra.mxu0 0.0
        %1772 = vmatprep.subr.mxu0 0.0
        %1773 = vmatpush1.msra.mxu0 0.0
        %1774 = vmatprep.subr.mxu0 0.0
        %1775 = vmatpush1.msra.mxu0 0.0
        %1776 = vmatprep.subr.mxu0 0.0
        %1777 = vmatpush1.msra.mxu0 0.0
        %1778 = vmatprep.subr.mxu0 0.0
        %1779 = vmatpush1.msra.mxu0 0.0
        %1780 = vmatprep.subr.mxu0 0.0
        %1781 = vmatpush1.msra.mxu0 0.0
        %1782 = vmatprep.subr.mxu0 0.0
        %1783 = vmatpush1.msra.mxu0 0.0
        %1784 = vmatprep.subr.mxu0 0.0
        %1785 = vmatpush1.msra.mxu0 0.0
        %1786 = vmatprep.subr.mxu0 0.0
        %1787 = vmatpush1.msra.mxu0 0.0
        %1788 = vmatprep.subr.mxu0 0.0
        %1789 = vmatpush1.msra.mxu0 0.0
        %1790 = vmatprep.subr.mxu0 0.0
        %1791 = vmatpush1.msra.mxu0 0.0
        %1792 = vmatprep.subr.mxu0 0.0
        %1793 = vmatpush1.msra.mxu0 0.0
        %1794 = vmatprep.subr.mxu0 0.0
        %1795 = vmatpush1.msra.mxu0 0.0
        %1796 = vmatprep.subr.mxu0 0.0
        %1797 = vmatpush1.msra.mxu0 0.0
        %1798 = vmatprep.subr.mxu0 0.0
        %1799 = vmatpush1.msra.mxu0 0.0
        %1800 = vmatprep.subr.mxu0 0.0
        %1801 = vmatpush1.msra.mxu0 0.0
        %1802 = vmatprep.subr.mxu0 0.0
        %1803 = vmatpush1.msra.mxu0 0.0
        %1804 = vmatprep.subr.mxu0 0.0
        %1805 = vmatpush1.msra.mxu0 0.0
        %1806 = vmatprep.subr.mxu0 0.0
        %1807 = vmatpush1.msra.mxu0 0.0
        %1808 = vmatprep.subr.mxu0 0.0
        %1809 = vmatpush1.msra.mxu0 0.0
        %1810 = vmatprep.subr.mxu0 0.0
        %1811 = vmatpush1.msra.mxu0 0.0
        %1812 = vmatprep.subr.mxu0 0.0
        %1813 = vmatpush1.msra.mxu0 0.0
        %1814 = vmatprep.subr.mxu0 0.0
        %1815 = vmatpush1.msra.mxu0 0.0
        %1816 = vmatprep.mubr.f32.mxu0 0.0
        %1817 = vmatmul.mubr.f32.gmra.mrb[0].mxu0 %v1747
        %v1818 = vpop.f32.mrb[0].mxu0
        %v1819 = vadd.f32 0.0, %v1818
        %v1820 = vpop.f32.mrb[0].mxu0
        %1821 = vmatprep.mubr.f32.mxu0 0.0
        %1822 = vmatmul.mubr.f32.gmra.mrb[0].mxu0 %v1750
        %v1823 = vpop.f32.mrb[0].mxu0
        %v1824 = vadd.f32 0.0, %v1823
        %v1825 = vpop.f32.mrb[0].mxu0
        %1826 = vdwg.mxu0
        %v1827 = vrcp.pop %v1736
        %v1828 = vrcp.pop %v1739
        %v1829 = vmul.f32 %v1819, %v1827
        %v1830 = vmul.f32 %v1824, %v1828
        %1831 = vrot.lane.b32.xlu0 %v1688, 120
        %v1832 = vpop.permute.xlu0 %1831
        %v1834 = vadd.f32 %v1829, %v1832
        %v1835 = vadd.f32 %v1830, %v1832
        %v1836 = vtanh.pop %v1834
        %v1837 = vtanh.pop %v1835
        %v1838 = vld [vmem:[%s13] sm:$0xff]
        %v1839 = vld [vmem:[%s13 + $0x8] sm:$0xff]
        %v1841 = vsel %vm623, %v1836, 0
        %v1844 = vsel %vm623, %v1837, 0
        %1846 = vmatprep.subr.mxu0 0.0
        %1847 = vmatpush1.msra.mxu0 %v1839
        %1848 = vmatprep.subr.mxu0 0.0
        %1849 = vmatpush1.msra.mxu0 0.0
        %1850 = vmatprep.subr.mxu0 0.0
        %1851 = vmatpush1.msra.mxu0 0.0
        %1852 = vmatprep.subr.mxu0 0.0
        %1853 = vmatpush1.msra.mxu0 0.0
        %1854 = vmatprep.subr.mxu0 0.0
        %1855 = vmatpush1.msra.mxu0 0.0
        %1856 = vmatprep.subr.mxu0 0.0
        %1857 = vmatpush1.msra.mxu0 0.0
        %1858 = vmatprep.subr.mxu0 0.0
        %1859 = vmatpush1.msra.mxu0 0.0
        %1860 = vmatprep.subr.mxu0 0.0
        %1861 = vmatpush1.msra.mxu0 0.0
        %1862 = vmatprep.subr.mxu0 0.0
        %1863 = vmatpush1.msra.mxu0 0.0
        %1864 = vmatprep.subr.mxu0 0.0
        %1865 = vmatpush1.msra.mxu0 0.0
        %1866 = vmatprep.subr.mxu0 0.0
        %1867 = vmatpush1.msra.mxu0 0.0
        %1868 = vmatprep.subr.mxu0 0.0
        %1869 = vmatpush1.msra.mxu0 0.0
        %1870 = vmatprep.subr.mxu0 0.0
        %1871 = vmatpush1.msra.mxu0 0.0
        %1872 = vmatprep.subr.mxu0 0.0
        %1873 = vmatpush1.msra.mxu0 0.0
        %1874 = vmatprep.subr.mxu0 0.0
        %1875 = vmatpush1.msra.mxu0 0.0
        %1876 = vmatprep.subr.mxu0 0.0
        %1877 = vmatpush1.msra.mxu0 0.0
        %1878 = vmatprep.subr.mxu0 0.0
        %1879 = vmatpush1.msra.mxu0 0.0
        %1880 = vmatprep.subr.mxu0 0.0
        %1881 = vmatpush1.msra.mxu0 0.0
        %1882 = vmatprep.subr.mxu0 0.0
        %1883 = vmatpush1.msra.mxu0 0.0
        %1884 = vmatprep.subr.mxu0 0.0
        %1885 = vmatpush1.msra.mxu0 0.0
        %1886 = vmatprep.subr.mxu0 0.0
        %1887 = vmatpush1.msra.mxu0 0.0
        %1888 = vmatprep.subr.mxu0 0.0
        %1889 = vmatpush1.msra.mxu0 0.0
        %1890 = vmatprep.subr.mxu0 0.0
        %1891 = vmatpush1.msra.mxu0 0.0
        %1892 = vmatprep.subr.mxu0 0.0
        %1893 = vmatpush1.msra.mxu0 0.0
        %1894 = vmatprep.subr.mxu0 0.0
        %1895 = vmatpush1.msra.mxu0 0.0
        %1896 = vmatprep.subr.mxu0 0.0
        %1897 = vmatpush1.msra.mxu0 0.0
        %1898 = vmatprep.subr.mxu0 0.0
        %1899 = vmatpush1.msra.mxu0 0.0
        %1900 = vmatprep.subr.mxu0 0.0
        %1901 = vmatpush1.msra.mxu0 0.0
        %1902 = vmatprep.subr.mxu0 0.0
        %1903 = vmatpush1.msra.mxu0 0.0
        %1904 = vmatprep.subr.mxu0 0.0
        %1905 = vmatpush1.msra.mxu0 0.0
        %1906 = vmatprep.subr.mxu0 0.0
        %1907 = vmatpush1.msra.mxu0 0.0
        %1908 = vmatprep.subr.mxu0 0.0
        %1909 = vmatpush1.msra.mxu0 0.0
        %1910 = vmatprep.mubr.f32.mxu0 0.0
        %1911 = vmatmul.mubr.f32.gmra.mrb[0].mxu0 %v1841
        %v1912 = vpop.f32.mrb[0].mxu0
        %v1913 = vadd.f32 0.0, %v1912
        %v1914 = vpop.f32.mrb[0].mxu0
        %1915 = vmatprep.mubr.f32.mxu0 0.0
        %1916 = vmatmul.mubr.f32.gmra.mrb[0].mxu0 %v1844
        %v1917 = vpop.f32.mrb[0].mxu0
        %v1918 = vadd.f32 0.0, %v1917
        %v1919 = vpop.f32.mrb[0].mxu0
        %1920 = vdwg.mxu0
        %v1922 = vsel %vm623, %v1692, 0
        %v1925 = vsel %vm623, %v1693, 0
        %1927 = vmatprep.subr.mxu0 0.0
        %1928 = vmatpush1.msra.mxu0 %v1838
        %1929 = vmatprep.subr.mxu0 0.0
        %1930 = vmatpush1.msra.mxu0 0.0
        %1931 = vmatprep.subr.mxu0 0.0
        %1932 = vmatpush1.msra.mxu0 0.0
        %1933 = vmatprep.subr.mxu0 0.0
        %1934 = vmatpush1.msra.mxu0 0.0
        %1935 = vmatprep.subr.mxu0 0.0
        %1936 = vmatpush1.msra.mxu0 0.0
        %1937 = vmatprep.subr.mxu0 0.0
        %1938 = vmatpush1.msra.mxu0 0.0
        %1939 = vmatprep.subr.mxu0 0.0
        %1940 = vmatpush1.msra.mxu0 0.0
        %1941 = vmatprep.subr.mxu0 0.0
        %1942 = vmatpush1.msra.mxu0 0.0
        %1943 = vmatprep.subr.mxu0 0.0
        %1944 = vmatpush1.msra.mxu0 0.0
        %1945 = vmatprep.subr.mxu0 0.0
        %1946 = vmatpush1.msra.mxu0 0.0
        %1947 = vmatprep.subr.mxu0 0.0
        %1948 = vmatpush1.msra.mxu0 0.0
        %1949 = vmatprep.subr.mxu0 0.0
        %1950 = vmatpush1.msra.mxu0 0.0
        %1951 = vmatprep.subr.mxu0 0.0
        %1952 = vmatpush1.msra.mxu0 0.0
        %1953 = vmatprep.subr.mxu0 0.0
        %1954 = vmatpush1.msra.mxu0 0.0
        %1955 = vmatprep.subr.mxu0 0.0
        %1956 = vmatpush1.msra.mxu0 0.0
        %1957 = vmatprep.subr.mxu0 0.0
        %1958 = vmatpush1.msra.mxu0 0.0
        %1959 = vmatprep.subr.mxu0 0.0
        %1960 = vmatpush1.msra.mxu0 0.0
        %1961 = vmatprep.subr.mxu0 0.0
        %1962 = vmatpush1.msra.mxu0 0.0
        %1963 = vmatprep.subr.mxu0 0.0
        %1964 = vmatpush1.msra.mxu0 0.0
        %1965 = vmatprep.subr.mxu0 0.0
        %1966 = vmatpush1.msra.mxu0 0.0
        %1967 = vmatprep.subr.mxu0 0.0
        %1968 = vmatpush1.msra.mxu0 0.0
        %1969 = vmatprep.subr.mxu0 0.0
        %1970 = vmatpush1.msra.mxu0 0.0
        %1971 = vmatprep.subr.mxu0 0.0
        %1972 = vmatpush1.msra.mxu0 0.0
        %1973 = vmatprep.subr.mxu0 0.0
        %1974 = vmatpush1.msra.mxu0 0.0
        %1975 = vmatprep.subr.mxu0 0.0
        %1976 = vmatpush1.msra.mxu0 0.0
        %1977 = vmatprep.subr.mxu0 0.0
        %1978 = vmatpush1.msra.mxu0 0.0
        %1979 = vmatprep.subr.mxu0 0.0
        %1980 = vmatpush1.msra.mxu0 0.0
        %1981 = vmatprep.subr.mxu0 0.0
        %1982 = vmatpush1.msra.mxu0 0.0
        %1983 = vmatprep.subr.mxu0 0.0
        %1984 = vmatpush1.msra.mxu0 0.0
        %1985 = vmatprep.subr.mxu0 0.0
        %1986 = vmatpush1.msra.mxu0 0.0
        %1987 = vmatprep.subr.mxu0 0.0
        %1988 = vmatpush1.msra.mxu0 0.0
        %1989 = vmatprep.subr.mxu0 0.0
        %1990 = vmatpush1.msra.mxu0 0.0
        %1991 = vmatprep.mubr.f32.mxu0 0.0
        %1992 = vmatmul.mubr.f32.gmra.mrb[0].mxu0 %v1922
        %v1993 = vpop.f32.mrb[0].mxu0
        %v1994 = vadd.f32 %v1913, %v1993
        %v1995 = vpop.f32.mrb[0].mxu0
        %1996 = vmatprep.mubr.f32.mxu0 0.0
        %1997 = vmatmul.mubr.f32.gmra.mrb[0].mxu0 %v1925
        %v1998 = vpop.f32.mrb[0].mxu0
        %v1999 = vadd.f32 %v1918, %v1998
        %v2000 = vpop.f32.mrb[0].mxu0
        %2001 = vdwg.mxu0
        %v2002 = vld [vmem:[%s15] sm:$0xff]
        %v2003 = vld [vmem:[%s15 + $0x8] sm:$0xff]
        %v2004 = vld [vmem:[%s15 + $0x10] sm:$0xff]
        %v2005 = vld [vmem:[%s15 + $0x18] sm:$0xff]
        %v2006 = vld [vmem:[%s15 + $0x20] sm:$0xff]
        %v2007 = vld [vmem:[%s15 + $0x28] sm:$0xff]
        %v2008 = vld [vmem:[%s15 + $0x30] sm:$0xff]
        %v2009 = vld [vmem:[%s15 + $0x38] sm:$0xff]
        %v2010 = vld [vmem:[%s15 + $0x40] sm:$0xff]
        %v2011 = vld [vmem:[%s15 + $0x48] sm:$0xff]
        %v2012 = vld [vmem:[%s15 + $0x50] sm:$0xff]
        %v2013 = vld [vmem:[%s15 + $0x58] sm:$0xff]
        %v2014 = vld [vmem:[%s15 + $0x60] sm:$0xff]
        %v2015 = vld [vmem:[%s15 + $0x68] sm:$0xff]
        %v2016 = vld [vmem:[%s15 + $0x70] sm:$0xff]
        %v2017 = vld [vmem:[%s15 + $0x78] sm:$0xff]
        %2018 = vmatprep.subr.mxu0 0.0
        %2019 = vmatpush1.msra.mxu0 %v2002
        %2020 = vmatprep.subr.mxu0 0.0
        %2021 = vmatpush1.msra.mxu0 %v2003
        %2022 = vmatprep.subr.mxu0 0.0
        %2023 = vmatpush1.msra.mxu0 %v2004
        %2024 = vmatprep.subr.mxu0 0.0
        %2025 = vmatpush1.msra.mxu0 %v2005
        %2026 = vmatprep.subr.mxu0 0.0
        %2027 = vmatpush1.msra.mxu0 %v2006
        %2028 = vmatprep.subr.mxu0 0.0
        %2029 = vmatpush1.msra.mxu0 %v2007
        %2030 = vmatprep.subr.mxu0 0.0
        %2031 = vmatpush1.msra.mxu0 %v2008
        %2032 = vmatprep.subr.mxu0 0.0
        %2033 = vmatpush1.msra.mxu0 %v2009
        %2034 = vmatprep.subr.mxu0 0.0
        %2035 = vmatpush1.msra.mxu0 %v2010
        %2036 = vmatprep.subr.mxu0 0.0
        %2037 = vmatpush1.msra.mxu0 %v2011
        %2038 = vmatprep.subr.mxu0 0.0
        %2039 = vmatpush1.msra.mxu0 %v2012
        %2040 = vmatprep.subr.mxu0 0.0
        %2041 = vmatpush1.msra.mxu0 %v2013
        %2042 = vmatprep.subr.mxu0 0.0
        %2043 = vmatpush1.msra.mxu0 %v2014
        %2044 = vmatprep.subr.mxu0 0.0
        %2045 = vmatpush1.msra.mxu0 %v2015
        %2046 = vmatprep.subr.mxu0 0.0
        %2047 = vmatpush1.msra.mxu0 %v2016
        %2048 = vmatprep.subr.mxu0 0.0
        %2049 = vmatpush1.msra.mxu0 %v2017
        %2050 = vmatprep.subr.mxu0 0.0
        %2051 = vmatpush1.msra.mxu0 0.0
        %2052 = vmatprep.subr.mxu0 0.0
        %2053 = vmatpush1.msra.mxu0 0.0
        %2054 = vmatprep.subr.mxu0 0.0
        %2055 = vmatpush1.msra.mxu0 0.0
        %2056 = vmatprep.subr.mxu0 0.0
        %2057 = vmatpush1.msra.mxu0 0.0
        %2058 = vmatprep.subr.mxu0 0.0
        %2059 = vmatpush1.msra.mxu0 0.0
        %2060 = vmatprep.subr.mxu0 0.0
        %2061 = vmatpush1.msra.mxu0 0.0
        %2062 = vmatprep.subr.mxu0 0.0
        %2063 = vmatpush1.msra.mxu0 0.0
        %2064 = vmatprep.subr.mxu0 0.0
        %2065 = vmatpush1.msra.mxu0 0.0
        %2066 = vmatprep.subr.mxu0 0.0
        %2067 = vmatpush1.msra.mxu0 0.0
        %2068 = vmatprep.subr.mxu0 0.0
        %2069 = vmatpush1.msra.mxu0 0.0
        %2070 = vmatprep.subr.mxu0 0.0
        %2071 = vmatpush1.msra.mxu0 0.0
        %2072 = vmatprep.subr.mxu0 0.0
        %2073 = vmatpush1.msra.mxu0 0.0
        %2074 = vmatprep.subr.mxu0 0.0
        %2075 = vmatpush1.msra.mxu0 0.0
        %2076 = vmatprep.subr.mxu0 0.0
        %2077 = vmatpush1.msra.mxu0 0.0
        %2078 = vmatprep.subr.mxu0 0.0
        %2079 = vmatpush1.msra.mxu0 0.0
        %2080 = vmatprep.subr.mxu0 0.0
        %2081 = vmatpush1.msra.mxu0 0.0
        %2082 = vmatprep.mubr.f32.mxu0 0.0
        %2083 = vmatmul.mubr.f32.gmra.mrb[0].mxu0 %v1994
        %v2084 = vpop.f32.mrb[0].mxu0
        %v2085 = vadd.f32 0.0, %v2084
        %v2086 = vpop.f32.mrb[0].mxu0
        %2087 = vmatprep.mubr.f32.mxu0 0.0
        %2088 = vmatmul.mubr.f32.gmra.mrb[0].mxu0 %v1999
        %v2089 = vpop.f32.mrb[0].mxu0
        %v2090 = vadd.f32 0.0, %v2089
        %v2091 = vpop.f32.mrb[0].mxu0
        %2092 = vdwg.mxu0
        %v2093 = vld [vmem:[%s14] sm:$0xff]
        %v2094 = vld [vmem:[%s14 + $0x8] sm:$0xff]
        %v2095 = vld [vmem:[%s14 + $0x10] sm:$0xff]
        %v2096 = vld [vmem:[%s14 + $0x18] sm:$0xff]
        %v2097 = vld [vmem:[%s14 + $0x20] sm:$0xff]
        %v2098 = vld [vmem:[%s14 + $0x28] sm:$0xff]
        %v2099 = vld [vmem:[%s14 + $0x30] sm:$0xff]
        %v2100 = vld [vmem:[%s14 + $0x38] sm:$0xff]
        %v2101 = vld [vmem:[%s14 + $0x40] sm:$0xff]
        %v2102 = vld [vmem:[%s14 + $0x48] sm:$0xff]
        %v2103 = vld [vmem:[%s14 + $0x50] sm:$0xff]
        %v2104 = vld [vmem:[%s14 + $0x58] sm:$0xff]
        %v2105 = vld [vmem:[%s14 + $0x60] sm:$0xff]
        %v2106 = vld [vmem:[%s14 + $0x68] sm:$0xff]
        %v2107 = vld [vmem:[%s14 + $0x70] sm:$0xff]
        %v2108 = vld [vmem:[%s14 + $0x78] sm:$0xff]
        %2109 = vxpose.xlu0.b32.start [1/16] %v2093, 128
        %2110 = vxpose.xlu0.b32.cont [2/16] %v2094, 128
        %2111 = vxpose.xlu0.b32.cont [3/16] %v2095, 128
        %2112 = vxpose.xlu0.b32.cont [4/16] %v2096, 128
        %2113 = vxpose.xlu0.b32.cont [5/16] %v2097, 128
        %2114 = vxpose.xlu0.b32.cont [6/16] %v2098, 128
        %2115 = vxpose.xlu0.b32.cont [7/16] %v2099, 128
        %2116 = vxpose.xlu0.b32.cont [8/16] %v2100, 128
        %2117 = vxpose.xlu0.b32.cont [9/16] %v2101, 128
        %2118 = vxpose.xlu0.b32.cont [10/16] %v2102, 128
        %2119 = vxpose.xlu0.b32.cont [11/16] %v2103, 128
        %2120 = vxpose.xlu0.b32.cont [12/16] %v2104, 128
        %2121 = vxpose.xlu0.b32.cont [13/16] %v2105, 128
        %2122 = vxpose.xlu0.b32.cont [14/16] %v2106, 128
        %2123 = vxpose.xlu0.b32.cont [15/16] %v2107, 128
        %2124 = vxpose.xlu0.b32.end [16/16] %v2108, 128
        %v2125 = vpop.trf.xlu0
        %v2126 = vpop.trf.xlu0
        %v2127 = vpop.trf.xlu0
        %v2128 = vpop.trf.xlu0
        %v2129 = vpop.trf.xlu0
        %v2130 = vpop.trf.xlu0
        %v2131 = vpop.trf.xlu0
        %v2132 = vpop.trf.xlu0
        %v2133 = vpop.trf.xlu0
        %v2134 = vpop.trf.xlu0
        %v2135 = vpop.trf.xlu0
        %v2136 = vpop.trf.xlu0
        %v2137 = vpop.trf.xlu0
        %v2138 = vpop.trf.xlu0
        %v2139 = vpop.trf.xlu0
        %v2140 = vpop.trf.xlu0
        %2141 = vmatprep.subr.mxu0 0.0
        %2142 = vmatpush1.xpose.msra.mxu0 %v1994
        %2143 = vmatprep.subr.mxu0 0.0
        %2144 = vmatpush1.xpose.msra.mxu0 %v1999
        %2145 = vmatprep.subr.mxu0 0.0
        %2146 = vmatpush1.xpose.msra.mxu0 0.0
        %2147 = vmatprep.subr.mxu0 0.0
        %2148 = vmatpush1.xpose.msra.mxu0 0.0
        %2149 = vmatprep.subr.mxu0 0.0
        %2150 = vmatpush1.xpose.msra.mxu0 0.0
        %2151 = vmatprep.subr.mxu0 0.0
        %2152 = vmatpush1.xpose.msra.mxu0 0.0
        %2153 = vmatprep.subr.mxu0 0.0
        %2154 = vmatpush1.xpose.msra.mxu0 0.0
        %2155 = vmatprep.subr.mxu0 0.0
        %2156 = vmatpush1.xpose.msra.mxu0 0.0
        %2157 = vmatprep.subr.mxu0 0.0
        %2158 = vmatpush1.xpose.msra.mxu0 0.0
        %2159 = vmatprep.subr.mxu0 0.0
        %2160 = vmatpush1.xpose.msra.mxu0 0.0
        %2161 = vmatprep.subr.mxu0 0.0
        %2162 = vmatpush1.xpose.msra.mxu0 0.0
        %2163 = vmatprep.subr.mxu0 0.0
        %2164 = vmatpush1.xpose.msra.mxu0 0.0
        %2165 = vmatprep.subr.mxu0 0.0
        %2166 = vmatpush1.xpose.msra.mxu0 0.0
        %2167 = vmatprep.subr.mxu0 0.0
        %2168 = vmatpush1.xpose.msra.mxu0 0.0
        %2169 = vmatprep.subr.mxu0 0.0
        %2170 = vmatpush1.xpose.msra.mxu0 0.0
        %2171 = vmatprep.subr.mxu0 0.0
        %2172 = vmatpush1.xpose.msra.mxu0 0.0
        %2173 = vmatprep.subr.mxu0 0.0
        %2174 = vmatpush1.xpose.msra.mxu0 0.0
        %2175 = vmatprep.subr.mxu0 0.0
        %2176 = vmatpush1.xpose.msra.mxu0 0.0
        %2177 = vmatprep.subr.mxu0 0.0
        %2178 = vmatpush1.xpose.msra.mxu0 0.0
        %2179 = vmatprep.subr.mxu0 0.0
        %2180 = vmatpush1.xpose.msra.mxu0 0.0
        %2181 = vmatprep.subr.mxu0 0.0
        %2182 = vmatpush1.xpose.msra.mxu0 0.0
        %2183 = vmatprep.subr.mxu0 0.0
        %2184 = vmatpush1.xpose.msra.mxu0 0.0
        %2185 = vmatprep.subr.mxu0 0.0
        %2186 = vmatpush1.xpose.msra.mxu0 0.0
        %2187 = vmatprep.subr.mxu0 0.0
        %2188 = vmatpush1.xpose.msra.mxu0 0.0
        %2189 = vmatprep.subr.mxu0 0.0
        %2190 = vmatpush1.xpose.msra.mxu0 0.0
        %2191 = vmatprep.subr.mxu0 0.0
        %2192 = vmatpush1.xpose.msra.mxu0 0.0
        %2193 = vmatprep.subr.mxu0 0.0
        %2194 = vmatpush1.xpose.msra.mxu0 0.0
        %2195 = vmatprep.subr.mxu0 0.0
        %2196 = vmatpush1.xpose.msra.mxu0 0.0
        %2197 = vmatprep.subr.mxu0 0.0
        %2198 = vmatpush1.xpose.msra.mxu0 0.0
        %2199 = vmatprep.subr.mxu0 0.0
        %2200 = vmatpush1.xpose.msra.mxu0 0.0
        %2201 = vmatprep.subr.mxu0 0.0
        %2202 = vmatpush1.xpose.msra.mxu0 0.0
        %2203 = vmatprep.subr.mxu0 0.0
        %2204 = vmatpush1.xpose.msra.mxu0 0.0
        %2205 = vmatprep.mubr.f32.mxu0 0.0
        %2206 = vmatmul.mubr.f32.gmra.mrb[0].mxu0 %v2125
        %v2207 = vpop.f32.mrb[0].mxu0
        %v2208 = vadd.f32 0.0, %v2207
        %v2209 = vpop.f32.mrb[0].mxu0
        %2210 = vdwg.mxu0
        %v2211 = vld [vmem:[#allocation2] sm:$0x1]
        %v2212 = vld [vmem:[%s17] sm:$0x1]
        %2214 = vset.pattern.permute.xlu0 0
        %2215 = vperm.xlu0 %2214, %v2085
        %v2216 = vpop.permute.xlu0 %2215
        %2219 = vset.pattern.permute.xlu0 0
        %2220 = vperm.xlu0 %2219, %v2090
        %v2221 = vpop.permute.xlu0 %2220
        %v2223 = vlaneseq
        %v2224 = vshrl.u32 %v2223, 7
        %v2225 = vsub.s32 0, %v2224
        %v2226 = vrot.slane %v2208, %v2225
        %v2227 = vadd.f32 %v2216, %v2226
        %v2228 = vadd.f32 %v2221, %v2226
        %v2230 = vlaneseq
        %v2231 = vshrl.u32 %v2230, 7
        %v2232 = vsub.s32 0, %v2231
        %v2233 = vrot.slane %v2211, %v2232
        %2234 = vset.pattern.permute.xlu0 0
        %2235 = vperm.xlu0 %2234, %v2233
        %v2236 = vpop.permute.xlu0 %2235
        %v2238 = vmul.f32 %v618, %v2236
        %v2239 = vmul.f32 %v619, %v2236
        %v2240 = vadd.f32 %v2227, %v2238
        %v2241 = vadd.f32 %v2228, %v2239
        %v2242 = vmul.f32 %v2240, 0.2
        %v2243 = vmul.f32 %v2241, 0.2
        %v2244 = vmax.f32 %v2240, %v2242
        %v2245 = vmax.f32 %v2241, %v2243
        %v2246 = vadd.f32 %v2244, %v616
        %v2247 = vadd.f32 %v2245, %v617
        %v2248 = vsel %vm707, %v2246, -inf
        %2249 = vmax.xlane.f32.xlu0 %v2248
        %v2250 = vpop.xlane.xlu0 %2249
        %v2251 = vsel %vm707, %v2247, -inf
        %2252 = vmax.xlane.f32.xlu0 %v2251
        %v2253 = vpop.xlane.xlu0 %2252
        %v2254 = vsub.f32 %v2246, %v2250
        %v2255 = vsub.f32 %v2247, %v2253
        %v2256 = vmul.f32 %v2254, 1.442695
        %v2257 = vpow.pop %v2256
        %v2258 = vmul.f32 %v2255, 1.442695
        %v2259 = vpow.pop %v2258
        %v2260 = vsel %vm707, %v2257, 0.0
        %2261 = vadd.xlane.f32.xlu0 %v2260
        %v2262 = vpop.xlane.xlu0 %2261
        %v2263 = vsel %vm707, %v2259, 0.0
        %2264 = vadd.xlane.f32.xlu0 %v2263
        %v2265 = vpop.xlane.xlu0 %2264
        %v2267 = vsel %vm707, %v2257, 0
        %v2270 = vsel %vm707, %v2259, 0
        %2272 = vmatprep.subr.mxu0 0.0
        %2273 = vmatpush1.msra.mxu0 %v1994
        %2274 = vmatprep.subr.mxu0 0.0
        %2275 = vmatpush1.msra.mxu0 %v1999
        %2276 = vmatprep.subr.mxu0 0.0
        %2277 = vmatpush1.msra.mxu0 0.0
        %2278 = vmatprep.subr.mxu0 0.0
        %2279 = vmatpush1.msra.mxu0 0.0
        %2280 = vmatprep.subr.mxu0 0.0
        %2281 = vmatpush1.msra.mxu0 0.0
        %2282 = vmatprep.subr.mxu0 0.0
        %2283 = vmatpush1.msra.mxu0 0.0
        %2284 = vmatprep.subr.mxu0 0.0
        %2285 = vmatpush1.msra.mxu0 0.0
        %2286 = vmatprep.subr.mxu0 0.0
        %2287 = vmatpush1.msra.mxu0 0.0
        %2288 = vmatprep.subr.mxu0 0.0
        %2289 = vmatpush1.msra.mxu0 0.0
        %2290 = vmatprep.subr.mxu0 0.0
        %2291 = vmatpush1.msra.mxu0 0.0
        %2292 = vmatprep.subr.mxu0 0.0
        %2293 = vmatpush1.msra.mxu0 0.0
        %2294 = vmatprep.subr.mxu0 0.0
        %2295 = vmatpush1.msra.mxu0 0.0
        %2296 = vmatprep.subr.mxu0 0.0
        %2297 = vmatpush1.msra.mxu0 0.0
        %2298 = vmatprep.subr.mxu0 0.0
        %2299 = vmatpush1.msra.mxu0 0.0
        %2300 = vmatprep.subr.mxu0 0.0
        %2301 = vmatpush1.msra.mxu0 0.0
        %2302 = vmatprep.subr.mxu0 0.0
        %2303 = vmatpush1.msra.mxu0 0.0
        %2304 = vmatprep.subr.mxu0 0.0
        %2305 = vmatpush1.msra.mxu0 0.0
        %2306 = vmatprep.subr.mxu0 0.0
        %2307 = vmatpush1.msra.mxu0 0.0
        %2308 = vmatprep.subr.mxu0 0.0
        %2309 = vmatpush1.msra.mxu0 0.0
        %2310 = vmatprep.subr.mxu0 0.0
        %2311 = vmatpush1.msra.mxu0 0.0
        %2312 = vmatprep.subr.mxu0 0.0
        %2313 = vmatpush1.msra.mxu0 0.0
        %2314 = vmatprep.subr.mxu0 0.0
        %2315 = vmatpush1.msra.mxu0 0.0
        %2316 = vmatprep.subr.mxu0 0.0
        %2317 = vmatpush1.msra.mxu0 0.0
        %2318 = vmatprep.subr.mxu0 0.0
        %2319 = vmatpush1.msra.mxu0 0.0
        %2320 = vmatprep.subr.mxu0 0.0
        %2321 = vmatpush1.msra.mxu0 0.0
        %2322 = vmatprep.subr.mxu0 0.0
        %2323 = vmatpush1.msra.mxu0 0.0
        %2324 = vmatprep.subr.mxu0 0.0
        %2325 = vmatpush1.msra.mxu0 0.0
        %2326 = vmatprep.subr.mxu0 0.0
        %2327 = vmatpush1.msra.mxu0 0.0
        %2328 = vmatprep.subr.mxu0 0.0
        %2329 = vmatpush1.msra.mxu0 0.0
        %2330 = vmatprep.subr.mxu0 0.0
        %2331 = vmatpush1.msra.mxu0 0.0
        %2332 = vmatprep.subr.mxu0 0.0
        %2333 = vmatpush1.msra.mxu0 0.0
        %2334 = vmatprep.subr.mxu0 0.0
        %2335 = vmatpush1.msra.mxu0 0.0
        %2336 = vmatprep.mubr.f32.mxu0 0.0
        %2337 = vmatmul.mubr.f32.gmra.mrb[0].mxu0 %v2267
        %v2338 = vpop.f32.mrb[0].mxu0
        %v2339 = vadd.f32 0.0, %v2338
        %v2340 = vpop.f32.mrb[0].mxu0
        %2341 = vmatprep.mubr.f32.mxu0 0.0
        %2342 = vmatmul.mubr.f32.gmra.mrb[0].mxu0 %v2270
        %v2343 = vpop.f32.mrb[0].mxu0
        %v2344 = vadd.f32 0.0, %v2343
        %v2345 = vpop.f32.mrb[0].mxu0
        %2346 = vdwg.mxu0
        %v2347 = vrcp.pop %v2262
        %v2348 = vrcp.pop %v2265
        %v2349 = vmul.f32 %v2339, %v2347
        %v2350 = vmul.f32 %v2344, %v2348
        %v2352 = vlaneseq
        %v2353 = vshrl.u32 %v2352, 7
        %v2354 = vsub.s32 0, %v2353
        %v2355 = vrot.slane %v2212, %v2354
        %v2357 = vadd.f32 %v2349, %v2355
        %v2358 = vadd.f32 %v2350, %v2355
        %v2359 = vtanh.pop %v2357
        %v2360 = vtanh.pop %v2358
        %v2361 = vxor.u32 %v2359, 2147483648
        %v2362 = vxor.u32 %v2360, 2147483648
        %v2363 = vmul.f32 %v2361, 1.442695
        %v2364 = vpow.pop %v2363
        %v2365 = vmul.f32 %v2362, 1.442695
        %v2366 = vpow.pop %v2365
        %v2367 = vadd.f32 %v2364, 1.0
        %v2368 = vadd.f32 %v2366, 1.0
        %v2369 = vrcp.pop %v2367
        %v2370 = vmul.f32 1.0, %v2369
        %v2371 = vrcp.pop %v2368
        %v2372 = vmul.f32 1.0, %v2371
        %2373 = vst [vmem:[%s600] sm:$0xff] %v2370
        %2374 = vst [vmem:[%s600 + $0x8] sm:$0xff] %v2372
        %s2375 = sand.u32 %s435, 1
        %s2376 = scalar_lea.sflag [#allocation4], %s2375
        %s2377 = sand.u32 %s435, 1
        %s2378 = smul.addr %s2377, 16
        %s2379 = scalar_lea.vmem [#allocation3], %s2378
        // Predicated region
        $region93: #{tpu_custom_call.1} parent=91 // pred_check
          %p2380 = pneg %p445
        $region94: #{tpu_custom_call.1} parent=91 // pred_check_branch
          %2382 = sbr.rel (%p2380) target = $region96
        $region95: #{tpu_custom_call.1} parent=91 // pred_region
          %s2384 = ssub.s32 256, 256
          %2385 = vsyncadd %s2376, %s2384
          %s2386 = smul.addr %s34, 2
          %s2387 = smul.addr %s2386, 128
          %s2388 = scalar_lea.hbm %s18, %s2387
          %s2389 = sshll.u32 %s2379, 4
          %s2390 = int_to_ptr.vmem [resolvable:$true] %s2389
          %2395 = dma.vmem_to_hbm [thread:$0]  %s2390, 256, %s2388, %s2376, 128, 128, 8
        $region96: #{tpu_custom_call.1} parent=91 // pred_fallthru
          _
      $region92: #{tpu_custom_call.1} parent=5 // pred_fallthru
        _
      %p2396 = scmp.le.s32.totalorder 2, %s29
      // Predicated region
      $region97: #{tpu_custom_call.1} parent=5 // pred_check
        %p2397 = pneg %p2396
      $region98: #{tpu_custom_call.1} parent=5 // pred_check_branch
        %2399 = sbr.rel (%p2397) target = $region100
      $region99: #{tpu_custom_call.1} parent=5 // pred_region
        %s2400 = ssub.s32 %s29, 2
        // Predicated region
        $region101: #{tpu_custom_call.1} parent=99 // pred_check
          %p2401 = pneg %p451
        $region102: #{tpu_custom_call.1} parent=99 // pred_check_branch
          %2403 = sbr.rel (%p2401) target = $region104
        $region103: #{tpu_custom_call.1} parent=99 // pred_region
          %s2404 = sand.u32 %s436, 1
          %s2405 = scalar_lea.sflag [#allocation4], %s2404
          %s2406 = sand.u32 %s436, 1
          %s2407 = smul.addr %s2406, 16
          %s2408 = scalar_lea.vmem [#allocation3], %s2407
          %2409 = dma.done %s2405, 256
        $region104: #{tpu_custom_call.1} parent=99 // pred_fallthru
          _
      $region100: #{tpu_custom_call.1} parent=5 // pred_fallthru
        _
    $region6: #{tpu_custom_call.1} parent=1 // loop_footer
      %s33 = sadd.s32 1, %s29
    $region7: #{tpu_custom_call.1} parent=1 // loop_footer_branch
      %28 = sbr.rel target = $region3
    $region8: #{tpu_custom_call.1} parent=1 // loop_exit
      _
    %2410 = vsyncpa [#allocation4], 1
    %s2411 = scalar_lea.sflag [#allocation4], 1
    %2412 = vsyncpa %s2411, 1

</llo_original>
